<compile_context>
chip_gen: v6e
topology: v6e:2x2x1
jax: 0.10.0
libtpu: 0.0.40
codegen_flags: <defaults>
</compile_context>

<pallas_src>
import jax
import jax.numpy as jnp
from jax.experimental import pallas as pl
from jax.experimental.pallas import tpu as pltpu


# ----------------------------- config ---------------------------------------
class Config:
    hidden_size = 128
    moe_intermediate_size = 128
    n_routed_experts = 8
    num_experts_per_tok = 4        # top_k
    n_group = 4
    topk_group = 2
    norm_topk_prob = True
    routed_scaling_factor = 2.5
    n_shared_experts = 2
    scoring_func = "sigmoid"
    topk_method = "noaux_tc"
    hidden_act = "silu"


# ----------------------------- fused MoE pallas_call -------------------------
def fused_moe(x_bf16, w_routed, gu_all, dw_all, sgu, sdw, *, token_tile):
    """x_bf16: [T_pad, H] bf16; w_routed: [T_pad, E] f32 dense routing weights;
    gu_all: [E, H, 2I] bf16 (gate|up fused); dw_all: [E, I, H] bf16;
    sgu: [H, 2*Is] bf16 shared gate|up; sdw: [Is, H] bf16 shared down."""
    T_pad, H = x_bf16.shape
    E, _, two_i = gu_all.shape
    I = two_i // 2
    Is = sdw.shape[0]
    TM = token_tile
    NTT = T_pad // TM

    def kernel(w_ref, x_ref, gu_ref, dw_ref, sgu_ref, sdw_ref, o_ref):
        x = x_ref[...]                                   # [TM, H] bf16
        w = w_ref[...]                                   # [TM, E] f32

        # Shared experts: one wide SwiGLU (intermediate Ns*I), implicit weight 1.0.
        gu_s = jnp.dot(x, sgu_ref[...], preferred_element_type=jnp.float32)   # [TM, 2*Is]
        g_s = gu_s[:, :Is]
        u_s = gu_s[:, Is:]
        h_s = (g_s * jax.nn.sigmoid(g_s)) * u_s
        acc = jnp.dot(h_s.astype(jnp.bfloat16), sdw_ref[...],
                      preferred_element_type=jnp.float32)                      # [TM, H]

        # Routed experts: statically unrolled; weights stay resident in VMEM across
        # all token tiles (constant index_map => no re-DMA). Unselected experts have
        # routing weight exactly 0.0 and contribute exact zeros.
        for e in range(E):
            gu = jnp.dot(x, gu_ref[e], preferred_element_type=jnp.float32)     # [TM, 2I]
            g = gu[:, :I]
            u = gu[:, I:]
            h = (g * jax.nn.sigmoid(g)) * u
            hw = h * w[:, e:e + 1]                       # weight before down-proj
            acc = acc + jnp.dot(hw.astype(jnp.bfloat16), dw_ref[e],
                                preferred_element_type=jnp.float32)

        o_ref[...] = acc.astype(o_ref.dtype)

    flops = 6 * T_pad * H * (E * I + Is)                 # fused gate+up + down matmuls
    transcendentals = T_pad * (E * I + Is)               # one sigmoid per h element
    bytes_accessed = (x_bf16.size * 2 + w_routed.size * 4 + gu_all.size * 2
                      + dw_all.size * 2 + sgu.size * 2 + sdw.size * 2
                      + T_pad * H * 4)

    return pl.pallas_call(
        kernel,
        out_shape=jax.ShapeDtypeStruct((T_pad, H), jnp.float32),
        grid=(NTT,),
        in_specs=[
            pl.BlockSpec((TM, E), lambda t: (t, 0)),              # routing weights
            pl.BlockSpec((TM, H), lambda t: (t, 0)),              # tokens
            pl.BlockSpec((E, H, two_i), lambda t: (0, 0, 0)),     # fused gate|up (resident)
            pl.BlockSpec((E, I, H), lambda t: (0, 0, 0)),         # down (resident)
            pl.BlockSpec((H, 2 * Is), lambda t: (0, 0)),          # shared gate|up (resident)
            pl.BlockSpec((Is, H), lambda t: (0, 0)),              # shared down (resident)
        ],
        out_specs=pl.BlockSpec((TM, H), lambda t: (t, 0)),
        compiler_params=pltpu.CompilerParams(
            dimension_semantics=("parallel",)),
        cost_estimate=pl.CostEstimate(
            flops=int(flops),
            transcendentals=int(transcendentals),
            bytes_accessed=int(bytes_accessed)),
    )(w_routed, x_bf16, gu_all, dw_all, sgu, sdw)


# ----------------------------- MoE gate routing (plain-JAX glue) -------------
def moe_gate(x_flat, gate_w, e_bias, cfg):
    """Dense per-token expert weights [T, E] (noaux_tc / sigmoid routing)."""
    T = x_flat.shape[0]
    E = cfg.n_routed_experts
    logits = jnp.dot(x_flat.astype(jnp.float32), gate_w.astype(jnp.float32).T)
    scores = jax.nn.sigmoid(logits)                                # [T, E]
    scores_for_choice = scores + e_bias[None, :]

    gsz = E // cfg.n_group
    group_scores = jnp.sum(
        jax.lax.top_k(scores_for_choice.reshape(T, cfg.n_group, gsz), 2)[0], axis=-1)
    group_idx = jax.lax.top_k(group_scores, cfg.topk_group)[1]     # [T, topk_group]
    group_mask = jnp.sum(jax.nn.one_hot(group_idx, cfg.n_group, dtype=scores.dtype),
                         axis=1)                                   # [T, n_group]
    score_mask = jnp.repeat(group_mask, gsz, axis=-1)              # [T, E]
    tmp_scores = jnp.where(score_mask > 0, scores_for_choice, 0.0)

    _, topk_idx = jax.lax.top_k(tmp_scores, cfg.num_experts_per_tok)
    topk_weight = jnp.take_along_axis(scores, topk_idx, axis=1)    # raw sigmoid scores
    if cfg.num_experts_per_tok > 1 and cfg.norm_topk_prob:
        topk_weight = topk_weight / (jnp.sum(topk_weight, axis=-1, keepdims=True) + 1e-20)
    topk_weight = topk_weight * cfg.routed_scaling_factor

    w_dense = jnp.sum(
        jax.nn.one_hot(topk_idx, E, dtype=jnp.float32) * topk_weight[..., None], axis=1)
    return w_dense                                                 # [T, E]


# ----------------------------- full module forward ---------------------------
def deepseek_v3_moe_forward(params, hidden_states, cfg):
    B, S, H = hidden_states.shape
    T = B * S
    x = hidden_states.reshape(T, H).astype(jnp.float32)            # [T, H]

    # Router in plain jnp (tiny; XLA fuses it around the pallas_call).
    w_dense = moe_gate(x, params["gate_weight"], params["e_score_bias"], cfg)  # [T, E]

    # Token tile: 16-sublane aligned (bf16 packing), capped at 128; force >=2 tiles so
    # the "parallel" token axis feeds both v7x TensorCores (padded rows contribute 0).
    if T <= 128:
        TM = max(16, -(-((T + 1) // 2) // 16) * 16)
    else:
        TM = 128
    NTT = max(2, -(-T // TM))
    T_pad = NTT * TM
    pad = T_pad - T
    x_p = jnp.pad(x, ((0, pad), (0, 0)))
    w_p = jnp.pad(w_dense, ((0, pad), (0, 0)))                     # [T_pad, E]

    out = fused_moe(x_p.astype(jnp.bfloat16), w_p,
                    params["gu_all"], params["dw_all"],
                    params["sgu"], params["sdw"], token_tile=TM)
    return out[:T].reshape(B, S, H).astype(hidden_states.dtype)


# ----------------------------- deterministic params --------------------------
def init_params(cfg, key):
    H, I, E = cfg.hidden_size, cfg.moe_intermediate_size, cfg.n_routed_experts
    Ns = cfg.n_shared_experts
    Is = I * Ns
    ks = jax.random.split(key, 7)
    s = 0.05
    # routed experts, pre-transposed to [E, H, I] / [E, I, H]
    gw = jax.random.normal(ks[1], (E, H, I), jnp.float32) * s
    uw = jax.random.normal(ks[2], (E, H, I), jnp.float32) * s
    dw = jax.random.normal(ks[3], (E, I, H), jnp.float32) * s
    # shared experts: one wide SwiGLU with intermediate Is
    sg = jax.random.normal(ks[4], (H, Is), jnp.float32) * s
    su = jax.random.normal(ks[5], (H, Is), jnp.float32) * s
    sd = jax.random.normal(ks[6], (Is, H), jnp.float32) * s
    return {
        "gate_weight": jax.random.normal(ks[0], (E, H), jnp.float32) * s,      # [E, H]
        "e_score_bias": jnp.zeros((E,), jnp.float32),
        # fused gate|up per routed expert, bf16 for the MXU
        "gu_all": jnp.concatenate([gw, uw], axis=-1).astype(jnp.bfloat16),     # [E, H, 2I]
        "dw_all": dw.astype(jnp.bfloat16),                                     # [E, I, H]
        "sgu": jnp.concatenate([sg, su], axis=-1).astype(jnp.bfloat16),        # [H, 2Is]
        "sdw": sd.astype(jnp.bfloat16),                                        # [Is, H]
    }


# ----------------------------- pure-JAX reference (sanity check) -------------
def ref_forward(params, hidden_states, cfg):
    B, S, H = hidden_states.shape
    x = hidden_states.reshape(-1, H).astype(jnp.float32)
    E = cfg.n_routed_experts
    I = cfg.moe_intermediate_size
    Is = I * cfg.n_shared_experts
    w = moe_gate(x, params["gate_weight"], params["e_score_bias"], cfg)
    xb = x.astype(jnp.bfloat16).astype(jnp.float32)

    # shared experts (weight 1.0)
    sgu = params["sgu"].astype(jnp.float32)
    sdw = params["sdw"].astype(jnp.float32)
    gu_s = xb @ sgu
    g_s, u_s = gu_s[:, :Is], gu_s[:, Is:]
    h_s = (g_s * jax.nn.sigmoid(g_s)) * u_s
    out = h_s.astype(jnp.bfloat16).astype(jnp.float32) @ sdw

    # routed experts
    for e in range(E):
        guw = params["gu_all"][e].astype(jnp.float32)
        dwe = params["dw_all"][e].astype(jnp.float32)
        gu = xb @ guw
        g, u = gu[:, :I], gu[:, I:]
        h = (g * jax.nn.sigmoid(g)) * u
        hw = (h * w[:, e:e + 1]).astype(jnp.bfloat16).astype(jnp.float32)
        out = out + hw @ dwe
    return out.reshape(B, S, H)


# ----------------------------- main -------------------------------------------
if __name__ == "__main__":
    cfg = Config()
    key = jax.random.PRNGKey(0)
    kx, kp = jax.random.split(key)

    B, S = 2, 8
    hidden_states = jax.random.normal(kx, (B, S, cfg.hidden_size), jnp.float32)
    params = init_params(cfg, kp)

    y = deepseek_v3_moe_forward(params, hidden_states, cfg)
    y = jax.block_until_ready(y)

    y_ref = jax.block_until_ready(ref_forward(params, hidden_states, cfg))
    assert y.shape == hidden_states.shape
    assert jnp.allclose(y, y_ref, atol=2e-3, rtol=2e-3), "mismatch vs reference"

    print("KERNEL_OK")
</pallas_src>

<mosaic_0001>
module attributes {stable_mosaic.version = 11 : i64} {
  func.func @kernel(%arg0: i32, %arg1: memref<16x8xf32, #tpu.memory_space<vmem>>, %arg2: memref<16x128xbf16, #tpu.memory_space<vmem>>, %arg3: memref<8x128x256xbf16, #tpu.memory_space<vmem>>, %arg4: memref<8x128x128xbf16, #tpu.memory_space<vmem>>, %arg5: memref<128x512xbf16, #tpu.memory_space<vmem>>, %arg6: memref<256x128xbf16, #tpu.memory_space<vmem>>, %arg7: memref<16x128xf32, #tpu.memory_space<vmem>>) attributes {dimension_semantics = [#tpu.dimension_semantics<parallel>], iteration_bounds = array<i64: 2>, scalar_prefetch = 0 : i64, scratch_operands = 0 : i64, tpu.core_type = #tpu.core_type<tc>, window_params = [{transform_indices = @transform_0, window_bounds = array<i64: 16, 8>}, {transform_indices = @transform_1, window_bounds = array<i64: 16, 128>}, {pipeline_mode = #tpu.pipeline_mode<synchronous>, transform_indices = @transform_2, window_bounds = array<i64: 8, 128, 256>}, {pipeline_mode = #tpu.pipeline_mode<synchronous>, transform_indices = @transform_3, window_bounds = array<i64: 8, 128, 128>}, {pipeline_mode = #tpu.pipeline_mode<synchronous>, transform_indices = @transform_4, window_bounds = array<i64: 128, 512>}, {pipeline_mode = #tpu.pipeline_mode<synchronous>, transform_indices = @transform_5, window_bounds = array<i64: 256, 128>}, {transform_indices = @transform_6, window_bounds = array<i64: 16, 128>}]} {
    %c0 = arith.constant 0 : index
    %c0_0 = arith.constant 0 : index
    %0 = vector.load %arg2[%c0, %c0_0] : memref<16x128xbf16, #tpu.memory_space<vmem>>, vector<16x128xbf16>
    %c0_1 = arith.constant 0 : index
    %c0_2 = arith.constant 0 : index
    %1 = vector.load %arg1[%c0_1, %c0_2] : memref<16x8xf32, #tpu.memory_space<vmem>>, vector<16x8xf32>
    %c0_3 = arith.constant 0 : index
    %c0_4 = arith.constant 0 : index
    %2 = vector.load %arg5[%c0_3, %c0_4] : memref<128x512xbf16, #tpu.memory_space<vmem>>, vector<128x512xbf16>
    %cst = arith.constant dense<0.000000e+00> : vector<16x512xf32>
    %3 = tpu.matmul %0, %2, %cst {dimension_numbers = #tpu.dot_dimension_numbers<[1], [0], [0], [1], [0, 0, 1, 1], [], []>} : vector<16x128xbf16>, vector<128x512xbf16>, vector<16x512xf32> -> vector<16x512xf32>
    %4 = vector.extract_strided_slice %3 {offsets = [0, 0], sizes = [16, 256], strides = [1, 1]} : vector<16x512xf32> to vector<16x256xf32>
    %5 = vector.extract_strided_slice %3 {offsets = [0, 256], sizes = [16, 256], strides = [1, 1]} : vector<16x512xf32> to vector<16x256xf32>
    %6 = arith.negf %4 : vector<16x256xf32>
    %7 = math.exp %6 : vector<16x256xf32>
    %cst_5 = arith.constant 1.000000e+00 : f32
    %8 = vector.broadcast %cst_5 : f32 to vector<16x256xf32>
    %9 = arith.addf %8, %7 : vector<16x256xf32>
    %10 = arith.divf %8, %9 : vector<16x256xf32>
    %11 = arith.mulf %4, %10 : vector<16x256xf32>
    %12 = arith.mulf %11, %5 : vector<16x256xf32>
    %13 = arith.truncf %12 : vector<16x256xf32> to vector<16x256xbf16>
    %c0_6 = arith.constant 0 : index
    %c0_7 = arith.constant 0 : index
    %14 = vector.load %arg6[%c0_6, %c0_7] : memref<256x128xbf16, #tpu.memory_space<vmem>>, vector<256x128xbf16>
    %cst_8 = arith.constant dense<0.000000e+00> : vector<16x128xf32>
    %15 = tpu.matmul %13, %14, %cst_8 {dimension_numbers = #tpu.dot_dimension_numbers<[1], [0], [0], [1], [0, 0, 1, 1], [], []>} : vector<16x256xbf16>, vector<256x128xbf16>, vector<16x128xf32> -> vector<16x128xf32>
    %c0_9 = arith.constant 0 : index
    %c0_10 = arith.constant 0 : index
    %c0_11 = arith.constant 0 : index
    %16 = vector.load %arg3[%c0_9, %c0_10, %c0_11] : memref<8x128x256xbf16, #tpu.memory_space<vmem>>, vector<1x128x256xbf16>
    %17 = vector.shape_cast %16 : vector<1x128x256xbf16> to vector<128x256xbf16>
    %cst_12 = arith.constant dense<0.000000e+00> : vector<16x256xf32>
    %18 = tpu.matmul %0, %17, %cst_12 {dimension_numbers = #tpu.dot_dimension_numbers<[1], [0], [0], [1], [0, 0, 1, 1], [], []>} : vector<16x128xbf16>, vector<128x256xbf16>, vector<16x256xf32> -> vector<16x256xf32>
    %19 = vector.extract_strided_slice %18 {offsets = [0, 0], sizes = [16, 128], strides = [1, 1]} : vector<16x256xf32> to vector<16x128xf32>
    %20 = vector.extract_strided_slice %18 {offsets = [0, 128], sizes = [16, 128], strides = [1, 1]} : vector<16x256xf32> to vector<16x128xf32>
    %21 = arith.negf %19 : vector<16x128xf32>
    %22 = math.exp %21 : vector<16x128xf32>
    %cst_13 = arith.constant 1.000000e+00 : f32
    %23 = vector.broadcast %cst_13 : f32 to vector<16x128xf32>
    %24 = arith.addf %23, %22 : vector<16x128xf32>
    %25 = arith.divf %23, %24 : vector<16x128xf32>
    %26 = arith.mulf %19, %25 : vector<16x128xf32>
    %27 = arith.mulf %26, %20 : vector<16x128xf32>
    %28 = vector.extract_strided_slice %1 {offsets = [0, 0], sizes = [16, 1], strides = [1, 1]} : vector<16x8xf32> to vector<16x1xf32>
    %29 = vector.broadcast %28 : vector<16x1xf32> to vector<16x128xf32>
    %30 = arith.mulf %27, %29 : vector<16x128xf32>
    %31 = arith.truncf %30 : vector<16x128xf32> to vector<16x128xbf16>
    %c0_14 = arith.constant 0 : index
    %c0_15 = arith.constant 0 : index
    %c0_16 = arith.constant 0 : index
    %32 = vector.load %arg4[%c0_14, %c0_15, %c0_16] : memref<8x128x128xbf16, #tpu.memory_space<vmem>>, vector<1x128x128xbf16>
    %33 = vector.shape_cast %32 : vector<1x128x128xbf16> to vector<128x128xbf16>
    %cst_17 = arith.constant dense<0.000000e+00> : vector<16x128xf32>
    %34 = tpu.matmul %31, %33, %cst_17 {dimension_numbers = #tpu.dot_dimension_numbers<[1], [0], [0], [1], [0, 0, 1, 1], [], []>} : vector<16x128xbf16>, vector<128x128xbf16>, vector<16x128xf32> -> vector<16x128xf32>
    %35 = arith.addf %15, %34 : vector<16x128xf32>
    %c1 = arith.constant 1 : index
    %c0_18 = arith.constant 0 : index
    %c0_19 = arith.constant 0 : index
    %36 = vector.load %arg3[%c1, %c0_18, %c0_19] : memref<8x128x256xbf16, #tpu.memory_space<vmem>>, vector<1x128x256xbf16>
    %37 = vector.shape_cast %36 : vector<1x128x256xbf16> to vector<128x256xbf16>
    %cst_20 = arith.constant dense<0.000000e+00> : vector<16x256xf32>
    %38 = tpu.matmul %0, %37, %cst_20 {dimension_numbers = #tpu.dot_dimension_numbers<[1], [0], [0], [1], [0, 0, 1, 1], [], []>} : vector<16x128xbf16>, vector<128x256xbf16>, vector<16x256xf32> -> vector<16x256xf32>
    %39 = vector.extract_strided_slice %38 {offsets = [0, 0], sizes = [16, 128], strides = [1, 1]} : vector<16x256xf32> to vector<16x128xf32>
    %40 = vector.extract_strided_slice %38 {offsets = [0, 128], sizes = [16, 128], strides = [1, 1]} : vector<16x256xf32> to vector<16x128xf32>
    %41 = arith.negf %39 : vector<16x128xf32>
    %42 = math.exp %41 : vector<16x128xf32>
    %cst_21 = arith.constant 1.000000e+00 : f32
    %43 = vector.broadcast %cst_21 : f32 to vector<16x128xf32>
    %44 = arith.addf %43, %42 : vector<16x128xf32>
    %45 = arith.divf %43, %44 : vector<16x128xf32>
    %46 = arith.mulf %39, %45 : vector<16x128xf32>
    %47 = arith.mulf %46, %40 : vector<16x128xf32>
    %48 = vector.extract_strided_slice %1 {offsets = [0, 1], sizes = [16, 1], strides = [1, 1]} : vector<16x8xf32> to vector<16x1xf32>
    %49 = vector.broadcast %48 : vector<16x1xf32> to vector<16x128xf32>
    %50 = arith.mulf %47, %49 : vector<16x128xf32>
    %51 = arith.truncf %50 : vector<16x128xf32> to vector<16x128xbf16>
    %c1_22 = arith.constant 1 : index
    %c0_23 = arith.constant 0 : index
    %c0_24 = arith.constant 0 : index
    %52 = vector.load %arg4[%c1_22, %c0_23, %c0_24] : memref<8x128x128xbf16, #tpu.memory_space<vmem>>, vector<1x128x128xbf16>
    %53 = vector.shape_cast %52 : vector<1x128x128xbf16> to vector<128x128xbf16>
    %cst_25 = arith.constant dense<0.000000e+00> : vector<16x128xf32>
    %54 = tpu.matmul %51, %53, %cst_25 {dimension_numbers = #tpu.dot_dimension_numbers<[1], [0], [0], [1], [0, 0, 1, 1], [], []>} : vector<16x128xbf16>, vector<128x128xbf16>, vector<16x128xf32> -> vector<16x128xf32>
    %55 = arith.addf %35, %54 : vector<16x128xf32>
    %c2 = arith.constant 2 : index
    %c0_26 = arith.constant 0 : index
    %c0_27 = arith.constant 0 : index
    %56 = vector.load %arg3[%c2, %c0_26, %c0_27] : memref<8x128x256xbf16, #tpu.memory_space<vmem>>, vector<1x128x256xbf16>
    %57 = vector.shape_cast %56 : vector<1x128x256xbf16> to vector<128x256xbf16>
    %cst_28 = arith.constant dense<0.000000e+00> : vector<16x256xf32>
    %58 = tpu.matmul %0, %57, %cst_28 {dimension_numbers = #tpu.dot_dimension_numbers<[1], [0], [0], [1], [0, 0, 1, 1], [], []>} : vector<16x128xbf16>, vector<128x256xbf16>, vector<16x256xf32> -> vector<16x256xf32>
    %59 = vector.extract_strided_slice %58 {offsets = [0, 0], sizes = [16, 128], strides = [1, 1]} : vector<16x256xf32> to vector<16x128xf32>
    %60 = vector.extract_strided_slice %58 {offsets = [0, 128], sizes = [16, 128], strides = [1, 1]} : vector<16x256xf32> to vector<16x128xf32>
    %61 = arith.negf %59 : vector<16x128xf32>
    %62 = math.exp %61 : vector<16x128xf32>
    %cst_29 = arith.constant 1.000000e+00 : f32
    %63 = vector.broadcast %cst_29 : f32 to vector<16x128xf32>
    %64 = arith.addf %63, %62 : vector<16x128xf32>
    %65 = arith.divf %63, %64 : vector<16x128xf32>
    %66 = arith.mulf %59, %65 : vector<16x128xf32>
    %67 = arith.mulf %66, %60 : vector<16x128xf32>
    %68 = vector.extract_strided_slice %1 {offsets = [0, 2], sizes = [16, 1], strides = [1, 1]} : vector<16x8xf32> to vector<16x1xf32>
    %69 = vector.broadcast %68 : vector<16x1xf32> to vector<16x128xf32>
    %70 = arith.mulf %67, %69 : vector<16x128xf32>
    %71 = arith.truncf %70 : vector<16x128xf32> to vector<16x128xbf16>
    %c2_30 = arith.constant 2 : index
    %c0_31 = arith.constant 0 : index
    %c0_32 = arith.constant 0 : index
    %72 = vector.load %arg4[%c2_30, %c0_31, %c0_32] : memref<8x128x128xbf16, #tpu.memory_space<vmem>>, vector<1x128x128xbf16>
    %73 = vector.shape_cast %72 : vector<1x128x128xbf16> to vector<128x128xbf16>
    %cst_33 = arith.constant dense<0.000000e+00> : vector<16x128xf32>
    %74 = tpu.matmul %71, %73, %cst_33 {dimension_numbers = #tpu.dot_dimension_numbers<[1], [0], [0], [1], [0, 0, 1, 1], [], []>} : vector<16x128xbf16>, vector<128x128xbf16>, vector<16x128xf32> -> vector<16x128xf32>
    %75 = arith.addf %55, %74 : vector<16x128xf32>
    %c3 = arith.constant 3 : index
    %c0_34 = arith.constant 0 : index
    %c0_35 = arith.constant 0 : index
    %76 = vector.load %arg3[%c3, %c0_34, %c0_35] : memref<8x128x256xbf16, #tpu.memory_space<vmem>>, vector<1x128x256xbf16>
    %77 = vector.shape_cast %76 : vector<1x128x256xbf16> to vector<128x256xbf16>
    %cst_36 = arith.constant dense<0.000000e+00> : vector<16x256xf32>
    %78 = tpu.matmul %0, %77, %cst_36 {dimension_numbers = #tpu.dot_dimension_numbers<[1], [0], [0], [1], [0, 0, 1, 1], [], []>} : vector<16x128xbf16>, vector<128x256xbf16>, vector<16x256xf32> -> vector<16x256xf32>
    %79 = vector.extract_strided_slice %78 {offsets = [0, 0], sizes = [16, 128], strides = [1, 1]} : vector<16x256xf32> to vector<16x128xf32>
    %80 = vector.extract_strided_slice %78 {offsets = [0, 128], sizes = [16, 128], strides = [1, 1]} : vector<16x256xf32> to vector<16x128xf32>
    %81 = arith.negf %79 : vector<16x128xf32>
    %82 = math.exp %81 : vector<16x128xf32>
    %cst_37 = arith.constant 1.000000e+00 : f32
    %83 = vector.broadcast %cst_37 : f32 to vector<16x128xf32>
    %84 = arith.addf %83, %82 : vector<16x128xf32>
    %85 = arith.divf %83, %84 : vector<16x128xf32>
    %86 = arith.mulf %79, %85 : vector<16x128xf32>
    %87 = arith.mulf %86, %80 : vector<16x128xf32>
    %88 = vector.extract_strided_slice %1 {offsets = [0, 3], sizes = [16, 1], strides = [1, 1]} : vector<16x8xf32> to vector<16x1xf32>
    %89 = vector.broadcast %88 : vector<16x1xf32> to vector<16x128xf32>
    %90 = arith.mulf %87, %89 : vector<16x128xf32>
    %91 = arith.truncf %90 : vector<16x128xf32> to vector<16x128xbf16>
    %c3_38 = arith.constant 3 : index
    %c0_39 = arith.constant 0 : index
    %c0_40 = arith.constant 0 : index
    %92 = vector.load %arg4[%c3_38, %c0_39, %c0_40] : memref<8x128x128xbf16, #tpu.memory_space<vmem>>, vector<1x128x128xbf16>
    %93 = vector.shape_cast %92 : vector<1x128x128xbf16> to vector<128x128xbf16>
    %cst_41 = arith.constant dense<0.000000e+00> : vector<16x128xf32>
    %94 = tpu.matmul %91, %93, %cst_41 {dimension_numbers = #tpu.dot_dimension_numbers<[1], [0], [0], [1], [0, 0, 1, 1], [], []>} : vector<16x128xbf16>, vector<128x128xbf16>, vector<16x128xf32> -> vector<16x128xf32>
    %95 = arith.addf %75, %94 : vector<16x128xf32>
    %c4 = arith.constant 4 : index
    %c0_42 = arith.constant 0 : index
    %c0_43 = arith.constant 0 : index
    %96 = vector.load %arg3[%c4, %c0_42, %c0_43] : memref<8x128x256xbf16, #tpu.memory_space<vmem>>, vector<1x128x256xbf16>
    %97 = vector.shape_cast %96 : vector<1x128x256xbf16> to vector<128x256xbf16>
    %cst_44 = arith.constant dense<0.000000e+00> : vector<16x256xf32>
    %98 = tpu.matmul %0, %97, %cst_44 {dimension_numbers = #tpu.dot_dimension_numbers<[1], [0], [0], [1], [0, 0, 1, 1], [], []>} : vector<16x128xbf16>, vector<128x256xbf16>, vector<16x256xf32> -> vector<16x256xf32>
    %99 = vector.extract_strided_slice %98 {offsets = [0, 0], sizes = [16, 128], strides = [1, 1]} : vector<16x256xf32> to vector<16x128xf32>
    %100 = vector.extract_strided_slice %98 {offsets = [0, 128], sizes = [16, 128], strides = [1, 1]} : vector<16x256xf32> to vector<16x128xf32>
    %101 = arith.negf %99 : vector<16x128xf32>
    %102 = math.exp %101 : vector<16x128xf32>
    %cst_45 = arith.constant 1.000000e+00 : f32
    %103 = vector.broadcast %cst_45 : f32 to vector<16x128xf32>
    %104 = arith.addf %103, %102 : vector<16x128xf32>
    %105 = arith.divf %103, %104 : vector<16x128xf32>
    %106 = arith.mulf %99, %105 : vector<16x128xf32>
    %107 = arith.mulf %106, %100 : vector<16x128xf32>
    %108 = vector.extract_strided_slice %1 {offsets = [0, 4], sizes = [16, 1], strides = [1, 1]} : vector<16x8xf32> to vector<16x1xf32>
    %109 = vector.broadcast %108 : vector<16x1xf32> to vector<16x128xf32>
    %110 = arith.mulf %107, %109 : vector<16x128xf32>
    %111 = arith.truncf %110 : vector<16x128xf32> to vector<16x128xbf16>
    %c4_46 = arith.constant 4 : index
    %c0_47 = arith.constant 0 : index
    %c0_48 = arith.constant 0 : index
    %112 = vector.load %arg4[%c4_46, %c0_47, %c0_48] : memref<8x128x128xbf16, #tpu.memory_space<vmem>>, vector<1x128x128xbf16>
    %113 = vector.shape_cast %112 : vector<1x128x128xbf16> to vector<128x128xbf16>
    %cst_49 = arith.constant dense<0.000000e+00> : vector<16x128xf32>
    %114 = tpu.matmul %111, %113, %cst_49 {dimension_numbers = #tpu.dot_dimension_numbers<[1], [0], [0], [1], [0, 0, 1, 1], [], []>} : vector<16x128xbf16>, vector<128x128xbf16>, vector<16x128xf32> -> vector<16x128xf32>
    %115 = arith.addf %95, %114 : vector<16x128xf32>
    %c5 = arith.constant 5 : index
    %c0_50 = arith.constant 0 : index
    %c0_51 = arith.constant 0 : index
    %116 = vector.load %arg3[%c5, %c0_50, %c0_51] : memref<8x128x256xbf16, #tpu.memory_space<vmem>>, vector<1x128x256xbf16>
    %117 = vector.shape_cast %116 : vector<1x128x256xbf16> to vector<128x256xbf16>
    %cst_52 = arith.constant dense<0.000000e+00> : vector<16x256xf32>
    %118 = tpu.matmul %0, %117, %cst_52 {dimension_numbers = #tpu.dot_dimension_numbers<[1], [0], [0], [1], [0, 0, 1, 1], [], []>} : vector<16x128xbf16>, vector<128x256xbf16>, vector<16x256xf32> -> vector<16x256xf32>
    %119 = vector.extract_strided_slice %118 {offsets = [0, 0], sizes = [16, 128], strides = [1, 1]} : vector<16x256xf32> to vector<16x128xf32>
    %120 = vector.extract_strided_slice %118 {offsets = [0, 128], sizes = [16, 128], strides = [1, 1]} : vector<16x256xf32> to vector<16x128xf32>
    %121 = arith.negf %119 : vector<16x128xf32>
    %122 = math.exp %121 : vector<16x128xf32>
    %cst_53 = arith.constant 1.000000e+00 : f32
    %123 = vector.broadcast %cst_53 : f32 to vector<16x128xf32>
    %124 = arith.addf %123, %122 : vector<16x128xf32>
    %125 = arith.divf %123, %124 : vector<16x128xf32>
    %126 = arith.mulf %119, %125 : vector<16x128xf32>
    %127 = arith.mulf %126, %120 : vector<16x128xf32>
    %128 = vector.extract_strided_slice %1 {offsets = [0, 5], sizes = [16, 1], strides = [1, 1]} : vector<16x8xf32> to vector<16x1xf32>
    %129 = vector.broadcast %128 : vector<16x1xf32> to vector<16x128xf32>
    %130 = arith.mulf %127, %129 : vector<16x128xf32>
    %131 = arith.truncf %130 : vector<16x128xf32> to vector<16x128xbf16>
    %c5_54 = arith.constant 5 : index
    %c0_55 = arith.constant 0 : index
    %c0_56 = arith.constant 0 : index
    %132 = vector.load %arg4[%c5_54, %c0_55, %c0_56] : memref<8x128x128xbf16, #tpu.memory_space<vmem>>, vector<1x128x128xbf16>
    %133 = vector.shape_cast %132 : vector<1x128x128xbf16> to vector<128x128xbf16>
    %cst_57 = arith.constant dense<0.000000e+00> : vector<16x128xf32>
    %134 = tpu.matmul %131, %133, %cst_57 {dimension_numbers = #tpu.dot_dimension_numbers<[1], [0], [0], [1], [0, 0, 1, 1], [], []>} : vector<16x128xbf16>, vector<128x128xbf16>, vector<16x128xf32> -> vector<16x128xf32>
    %135 = arith.addf %115, %134 : vector<16x128xf32>
    %c6 = arith.constant 6 : index
    %c0_58 = arith.constant 0 : index
    %c0_59 = arith.constant 0 : index
    %136 = vector.load %arg3[%c6, %c0_58, %c0_59] : memref<8x128x256xbf16, #tpu.memory_space<vmem>>, vector<1x128x256xbf16>
    %137 = vector.shape_cast %136 : vector<1x128x256xbf16> to vector<128x256xbf16>
    %cst_60 = arith.constant dense<0.000000e+00> : vector<16x256xf32>
    %138 = tpu.matmul %0, %137, %cst_60 {dimension_numbers = #tpu.dot_dimension_numbers<[1], [0], [0], [1], [0, 0, 1, 1], [], []>} : vector<16x128xbf16>, vector<128x256xbf16>, vector<16x256xf32> -> vector<16x256xf32>
    %139 = vector.extract_strided_slice %138 {offsets = [0, 0], sizes = [16, 128], strides = [1, 1]} : vector<16x256xf32> to vector<16x128xf32>
    %140 = vector.extract_strided_slice %138 {offsets = [0, 128], sizes = [16, 128], strides = [1, 1]} : vector<16x256xf32> to vector<16x128xf32>
    %141 = arith.negf %139 : vector<16x128xf32>
    %142 = math.exp %141 : vector<16x128xf32>
    %cst_61 = arith.constant 1.000000e+00 : f32
    %143 = vector.broadcast %cst_61 : f32 to vector<16x128xf32>
    %144 = arith.addf %143, %142 : vector<16x128xf32>
    %145 = arith.divf %143, %144 : vector<16x128xf32>
    %146 = arith.mulf %139, %145 : vector<16x128xf32>
    %147 = arith.mulf %146, %140 : vector<16x128xf32>
    %148 = vector.extract_strided_slice %1 {offsets = [0, 6], sizes = [16, 1], strides = [1, 1]} : vector<16x8xf32> to vector<16x1xf32>
    %149 = vector.broadcast %148 : vector<16x1xf32> to vector<16x128xf32>
    %150 = arith.mulf %147, %149 : vector<16x128xf32>
    %151 = arith.truncf %150 : vector<16x128xf32> to vector<16x128xbf16>
    %c6_62 = arith.constant 6 : index
    %c0_63 = arith.constant 0 : index
    %c0_64 = arith.constant 0 : index
    %152 = vector.load %arg4[%c6_62, %c0_63, %c0_64] : memref<8x128x128xbf16, #tpu.memory_space<vmem>>, vector<1x128x128xbf16>
    %153 = vector.shape_cast %152 : vector<1x128x128xbf16> to vector<128x128xbf16>
    %cst_65 = arith.constant dense<0.000000e+00> : vector<16x128xf32>
    %154 = tpu.matmul %151, %153, %cst_65 {dimension_numbers = #tpu.dot_dimension_numbers<[1], [0], [0], [1], [0, 0, 1, 1], [], []>} : vector<16x128xbf16>, vector<128x128xbf16>, vector<16x128xf32> -> vector<16x128xf32>
    %155 = arith.addf %135, %154 : vector<16x128xf32>
    %c7 = arith.constant 7 : index
    %c0_66 = arith.constant 0 : index
    %c0_67 = arith.constant 0 : index
    %156 = vector.load %arg3[%c7, %c0_66, %c0_67] : memref<8x128x256xbf16, #tpu.memory_space<vmem>>, vector<1x128x256xbf16>
    %157 = vector.shape_cast %156 : vector<1x128x256xbf16> to vector<128x256xbf16>
    %cst_68 = arith.constant dense<0.000000e+00> : vector<16x256xf32>
    %158 = tpu.matmul %0, %157, %cst_68 {dimension_numbers = #tpu.dot_dimension_numbers<[1], [0], [0], [1], [0, 0, 1, 1], [], []>} : vector<16x128xbf16>, vector<128x256xbf16>, vector<16x256xf32> -> vector<16x256xf32>
    %159 = vector.extract_strided_slice %158 {offsets = [0, 0], sizes = [16, 128], strides = [1, 1]} : vector<16x256xf32> to vector<16x128xf32>
    %160 = vector.extract_strided_slice %158 {offsets = [0, 128], sizes = [16, 128], strides = [1, 1]} : vector<16x256xf32> to vector<16x128xf32>
    %161 = arith.negf %159 : vector<16x128xf32>
    %162 = math.exp %161 : vector<16x128xf32>
    %cst_69 = arith.constant 1.000000e+00 : f32
    %163 = vector.broadcast %cst_69 : f32 to vector<16x128xf32>
    %164 = arith.addf %163, %162 : vector<16x128xf32>
    %165 = arith.divf %163, %164 : vector<16x128xf32>
    %166 = arith.mulf %159, %165 : vector<16x128xf32>
    %167 = arith.mulf %166, %160 : vector<16x128xf32>
    %168 = vector.extract_strided_slice %1 {offsets = [0, 7], sizes = [16, 1], strides = [1, 1]} : vector<16x8xf32> to vector<16x1xf32>
    %169 = vector.broadcast %168 : vector<16x1xf32> to vector<16x128xf32>
    %170 = arith.mulf %167, %169 : vector<16x128xf32>
    %171 = arith.truncf %170 : vector<16x128xf32> to vector<16x128xbf16>
    %c7_70 = arith.constant 7 : index
    %c0_71 = arith.constant 0 : index
    %c0_72 = arith.constant 0 : index
    %172 = vector.load %arg4[%c7_70, %c0_71, %c0_72] : memref<8x128x128xbf16, #tpu.memory_space<vmem>>, vector<1x128x128xbf16>
    %173 = vector.shape_cast %172 : vector<1x128x128xbf16> to vector<128x128xbf16>
    %cst_73 = arith.constant dense<0.000000e+00> : vector<16x128xf32>
    %174 = tpu.matmul %171, %173, %cst_73 {dimension_numbers = #tpu.dot_dimension_numbers<[1], [0], [0], [1], [0, 0, 1, 1], [], []>} : vector<16x128xbf16>, vector<128x128xbf16>, vector<16x128xf32> -> vector<16x128xf32>
    %175 = arith.addf %155, %174 : vector<16x128xf32>
    %c0_74 = arith.constant 0 : index
    %c0_75 = arith.constant 0 : index
    %176 = vector.load %arg7[%c0_74, %c0_75] : memref<16x128xf32, #tpu.memory_space<vmem>>, vector<16x128xf32>
    tpu.vector_store %arg7[%c0_74, %c0_75], %175 {strides = array<i32>} : memref<16x128xf32, #tpu.memory_space<vmem>>, vector<16x128xf32>,
    return
  }
  func.func @transform_0(%arg0: i32) -> (i32, i32) {
    %c0_i32 = arith.constant 0 : i32
    %c0_i32_0 = arith.constant 0 : i32
    return %arg0, %c0_i32 : i32, i32
  }
  func.func @transform_1(%arg0: i32) -> (i32, i32) {
    %c0_i32 = arith.constant 0 : i32
    %c0_i32_0 = arith.constant 0 : i32
    return %arg0, %c0_i32 : i32, i32
  }
  func.func @transform_2(%arg0: i32) -> (i32, i32, i32) {
    %c0_i32 = arith.constant 0 : i32
    %c0_i32_0 = arith.constant 0 : i32
    %c0_i32_1 = arith.constant 0 : i32
    %c0_i32_2 = arith.constant 0 : i32
    return %c0_i32, %c0_i32_0, %c0_i32_1 : i32, i32, i32
  }
  func.func @transform_3(%arg0: i32) -> (i32, i32, i32) {
    %c0_i32 = arith.constant 0 : i32
    %c0_i32_0 = arith.constant 0 : i32
    %c0_i32_1 = arith.constant 0 : i32
    %c0_i32_2 = arith.constant 0 : i32
    return %c0_i32, %c0_i32_0, %c0_i32_1 : i32, i32, i32
  }
  func.func @transform_4(%arg0: i32) -> (i32, i32) {
    %c0_i32 = arith.constant 0 : i32
    %c0_i32_0 = arith.constant 0 : i32
    %c0_i32_1 = arith.constant 0 : i32
    return %c0_i32, %c0_i32_0 : i32, i32
  }
  func.func @transform_5(%arg0: i32) -> (i32, i32) {
    %c0_i32 = arith.constant 0 : i32
    %c0_i32_0 = arith.constant 0 : i32
    %c0_i32_1 = arith.constant 0 : i32
    return %c0_i32, %c0_i32_0 : i32, i32
  }
  func.func @transform_6(%arg0: i32) -> (i32, i32) {
    %c0_i32 = arith.constant 0 : i32
    %c0_i32_0 = arith.constant 0 : i32
    return %arg0, %c0_i32 : i32, i32
  }
}

</mosaic_0001>

<llo_original>
// kernel: tpu_custom_call.1
$region0: #{tpu_custom_call.1}
  #allocation0 [shape = 'u32[]', space=smem, size = 0x4, offset = 0x4, fixed_abs, tag = 'smem constant byte address 0x4 - core index']
  #allocation1 [shape = 'u32[144,128]{1,0:T(1,128)}', space=vmem, size = 0x12000, scoped, tag = 'internal scratch']
  %s0 = inlined_call_operand.vmem [shape: f32[32,8], index: 0, kind: input, shape index: {}]
  %s1 = inlined_call_operand.vmem [shape: bf16[32,128], index: 1, kind: input, shape index: {}]
  %s2 = inlined_call_operand.hbm [shape: bf16[8,128,256], index: 2, kind: input, shape index: {}]
  %s3 = inlined_call_operand.hbm [shape: bf16[8,128,128], index: 3, kind: input, shape index: {}]
  %s4 = inlined_call_operand.hbm [shape: bf16[128,512], index: 4, kind: input, shape index: {}]
  %s5 = inlined_call_operand.hbm [shape: bf16[256,128], index: 5, kind: input, shape index: {}]
  %s6 = inlined_call_operand.hbm [shape: f32[32,128], index: 6, kind: output, shape index: {}]
  %s7 = sld [smem:[#allocation0]]
  $region73: #{tpu_custom_call.1} parent=0
    _
  %s9 = ssub.s32 1, %s7
  %s10 = scalar_select 0, %s9, %s7
  $region1: #{tpu_custom_call.1} parent=0
    #allocation2 [shape = 'u8[524288]{0}', space=vmem, size = 0x80000, scoped, tag = 'input window, operand 2, single buffered']
    #allocation3 [shape = 's32[2]{0}', space=sflag, size = 0x8, scoped, tag = 'scoped memory for tpu_custom_call.1']
    #allocation4 [shape = 's32[2]{0}', space=sflag, size = 0x8, scoped, tag = 'scoped memory for tpu_custom_call.1']
    #allocation5 [shape = 'u8[262144]{0}', space=vmem, size = 0x40000, scoped, tag = 'input window, operand 3, single buffered']
    #allocation6 [shape = 's32[1]{0}', space=sflag, size = 0x4, scoped, tag = 'scoped memory for tpu_custom_call.1']
    #allocation7 [shape = 'u8[131072]{0}', space=vmem, size = 0x20000, scoped, tag = 'input window, operand 4, single buffered']
    #allocation8 [shape = 'u8[65536]{0}', space=vmem, size = 0x10000, scoped, tag = 'input window, operand 5, single buffered']
    #allocation9 [shape = 's32[1]{0}', space=sflag, size = 0x4, scoped, tag = 'scoped memory for tpu_custom_call.1']
    #allocation10 [shape = 'u8[16384]{0}', space=vmem, size = 0x4000, scoped, tag = 'output window, operand 0']
    %11 = vsyncpa [#allocation3], 0
    %12 = vsyncpa [#allocation6], 0
    %13 = vsyncpa [#allocation9], 0
    %14 = vsyncpa [#allocation4], 0
    %s15 = scalar_lea.sflag [#allocation4], 1
    %16 = vsyncpa %s15, 0
    loop: start=0, step=1, limit=4
    $region2: #{tpu_custom_call.1} parent=1 // loop_pre_header
      _
    $region3: #{tpu_custom_call.1} parent=1 // loop_header
      %s18 = sphi 0, %s22
      %p19 = scmp.ge.s32.totalorder %s18, 4
      %s28 = sphi 0, %s30
      %s31 = sphi 0, %s28
      %s32 = sphi 0, %s31
      %s48 = sphi 0, %s32
      %s54 = sphi 0, %s56
      %s57 = sphi 0, %s54
      %s58 = sphi 0, %s57
      %s74 = sphi 0, %s58
      %s78 = sphi 0, %s78
      %s80 = sphi 0, %s78
      %s81 = sphi 0, %s80
      %s95 = sphi 0, %s81
      %s99 = sphi 0, %s99
      %s101 = sphi 0, %s99
      %s102 = sphi 0, %s101
      %s116 = sphi 0, %s102
      %s120 = sphi 0, %s120
      %s122 = sphi 0, %s120
      %s123 = sphi 0, %s122
      %s137 = sphi 0, %s123
      %s141 = sphi 0, %s141
      %s143 = sphi 0, %s141
      %s144 = sphi 0, %s143
      %s158 = sphi 0, %s144
      %s164 = sphi 0, %s166
      %s167 = sphi 0, %s164
      %s168 = sphi 0, %s167
      %s184 = sphi 0, %s168
    $region4: #{tpu_custom_call.1} parent=1 // loop_header_branch
      %21 = sbr.rel (%p19) target = $region8
    $region5: #{tpu_custom_call.1} parent=1 // loop_body
      %s23 = ssub.s32 %s18, 1
      %s24 = ssub.s32 %s18, 2
      %s25 = sadd.s32 %s18, 1
      %s26 = ssub.s32 %s18, %s25
      %p27 = scmp.eq.s32.totalorder %s26, 0
      %s29 = sadd.s32 %s28, 1
      %s30 = scalar_select %p27, %s28, %s29
      %p33 = pneg %p27
      %p34 = scmp.eq.s32.totalorder %s18, 1
      %p35 = por %p33, %p34
      %p36 = scmp.ne.s32.totalorder %s28, %s31
      %p37 = scmp.eq.s32.totalorder %s18, 0
      %p38 = por %p36, %p37
      %p39 = scmp.ne.s32.totalorder %s28, %s31
      %p40 = scmp.eq.s32.totalorder %s23, 1
      %p41 = por %p39, %p40
      %p42 = scmp.ne.s32.totalorder %s31, %s32
      %p43 = scmp.eq.s32.totalorder %s23, 0
      %p44 = por %p42, %p43
      %p45 = scmp.ne.s32.totalorder %s31, %s32
      %p46 = scmp.eq.s32.totalorder %s24, 1
      %p47 = por %p45, %p46
      %p49 = scmp.ne.s32.totalorder %s32, %s48
      %p50 = scmp.eq.s32.totalorder %s24, 0
      %p51 = por %p49, %p50
      %s52 = ssub.s32 %s18, %s25
      %p53 = scmp.eq.s32.totalorder %s52, 0
      %s55 = sadd.s32 %s54, 1
      %s56 = scalar_select %p53, %s54, %s55
      %p59 = pneg %p53
      %p60 = scmp.eq.s32.totalorder %s18, 1
      %p61 = por %p59, %p60
      %p62 = scmp.ne.s32.totalorder %s54, %s57
      %p63 = scmp.eq.s32.totalorder %s18, 0
      %p64 = por %p62, %p63
      %p65 = scmp.ne.s32.totalorder %s54, %s57
      %p66 = scmp.eq.s32.totalorder %s23, 1
      %p67 = por %p65, %p66
      %p68 = scmp.ne.s32.totalorder %s57, %s58
      %p69 = scmp.eq.s32.totalorder %s23, 0
      %p70 = por %p68, %p69
      %p71 = scmp.ne.s32.totalorder %s57, %s58
      %p72 = scmp.eq.s32.totalorder %s24, 1
      %p73 = por %p71, %p72
      %p75 = scmp.ne.s32.totalorder %s58, %s74
      %p76 = scmp.eq.s32.totalorder %s24, 0
      %p77 = por %p75, %p76
      %s79 = sadd.s32 %s78, 1
      %p82 = scmp.eq.s32.totalorder %s18, 1
      %p83 = scmp.ne.s32.totalorder %s78, %s80
      %p84 = scmp.eq.s32.totalorder %s18, 0
      %p85 = por %p83, %p84
      %p86 = scmp.ne.s32.totalorder %s78, %s80
      %p87 = scmp.eq.s32.totalorder %s23, 1
      %p88 = por %p86, %p87
      %p89 = scmp.ne.s32.totalorder %s80, %s81
      %p90 = scmp.eq.s32.totalorder %s23, 0
      %p91 = por %p89, %p90
      %p92 = scmp.ne.s32.totalorder %s80, %s81
      %p93 = scmp.eq.s32.totalorder %s24, 1
      %p94 = por %p92, %p93
      %p96 = scmp.ne.s32.totalorder %s81, %s95
      %p97 = scmp.eq.s32.totalorder %s24, 0
      %p98 = por %p96, %p97
      %s100 = sadd.s32 %s99, 1
      %p103 = scmp.eq.s32.totalorder %s18, 1
      %p104 = scmp.ne.s32.totalorder %s99, %s101
      %p105 = scmp.eq.s32.totalorder %s18, 0
      %p106 = por %p104, %p105
      %p107 = scmp.ne.s32.totalorder %s99, %s101
      %p108 = scmp.eq.s32.totalorder %s23, 1
      %p109 = por %p107, %p108
      %p110 = scmp.ne.s32.totalorder %s101, %s102
      %p111 = scmp.eq.s32.totalorder %s23, 0
      %p112 = por %p110, %p111
      %p113 = scmp.ne.s32.totalorder %s101, %s102
      %p114 = scmp.eq.s32.totalorder %s24, 1
      %p115 = por %p113, %p114
      %p117 = scmp.ne.s32.totalorder %s102, %s116
      %p118 = scmp.eq.s32.totalorder %s24, 0
      %p119 = por %p117, %p118
      %s121 = sadd.s32 %s120, 1
      %p124 = scmp.eq.s32.totalorder %s18, 1
      %p125 = scmp.ne.s32.totalorder %s120, %s122
      %p126 = scmp.eq.s32.totalorder %s18, 0
      %p127 = por %p125, %p126
      %p128 = scmp.ne.s32.totalorder %s120, %s122
      %p129 = scmp.eq.s32.totalorder %s23, 1
      %p130 = por %p128, %p129
      %p131 = scmp.ne.s32.totalorder %s122, %s123
      %p132 = scmp.eq.s32.totalorder %s23, 0
      %p133 = por %p131, %p132
      %p134 = scmp.ne.s32.totalorder %s122, %s123
      %p135 = scmp.eq.s32.totalorder %s24, 1
      %p136 = por %p134, %p135
      %p138 = scmp.ne.s32.totalorder %s123, %s137
      %p139 = scmp.eq.s32.totalorder %s24, 0
      %p140 = por %p138, %p139
      %s142 = sadd.s32 %s141, 1
      %p145 = scmp.eq.s32.totalorder %s18, 1
      %p146 = scmp.ne.s32.totalorder %s141, %s143
      %p147 = scmp.eq.s32.totalorder %s18, 0
      %p148 = por %p146, %p147
      %p149 = scmp.ne.s32.totalorder %s141, %s143
      %p150 = scmp.eq.s32.totalorder %s23, 1
      %p151 = por %p149, %p150
      %p152 = scmp.ne.s32.totalorder %s143, %s144
      %p153 = scmp.eq.s32.totalorder %s23, 0
      %p154 = por %p152, %p153
      %p155 = scmp.ne.s32.totalorder %s143, %s144
      %p156 = scmp.eq.s32.totalorder %s24, 1
      %p157 = por %p155, %p156
      %p159 = scmp.ne.s32.totalorder %s144, %s158
      %p160 = scmp.eq.s32.totalorder %s24, 0
      %p161 = por %p159, %p160
      %s162 = ssub.s32 %s18, %s25
      %p163 = scmp.eq.s32.totalorder %s162, 0
      %s165 = sadd.s32 %s164, 1
      %s166 = scalar_select %p163, %s164, %s165
      %p169 = pneg %p163
      %p170 = scmp.eq.s32.totalorder %s18, 1
      %p171 = por %p169, %p170
      %p172 = scmp.ne.s32.totalorder %s164, %s167
      %p173 = scmp.eq.s32.totalorder %s18, 0
      %p174 = por %p172, %p173
      %p175 = scmp.ne.s32.totalorder %s164, %s167
      %p176 = scmp.eq.s32.totalorder %s23, 1
      %p177 = por %p175, %p176
      %p178 = scmp.ne.s32.totalorder %s167, %s168
      %p179 = scmp.eq.s32.totalorder %s23, 0
      %p180 = por %p178, %p179
      %p181 = scmp.ne.s32.totalorder %s167, %s168
      %p182 = scmp.eq.s32.totalorder %s24, 1
      %p183 = por %p181, %p182
      %p185 = scmp.ne.s32.totalorder %s168, %s184
      %p186 = scmp.eq.s32.totalorder %s24, 0
      %p187 = por %p185, %p186
      %p188 = scmp.le.s32.totalorder 1, %s18
      %p189 = scmp.lt.s32.totalorder %s18, 3
      %p190 = pnand %p188, %p189
      %p191 = pneg %p190
      // Predicated region
      $region9: #{tpu_custom_call.1} parent=5 // pred_check
        _
      $region10: #{tpu_custom_call.1} parent=5 // pred_check_branch
        %193 = sbr.rel (%p190) target = $region12
      $region11: #{tpu_custom_call.1} parent=5 // pred_region
        %s194 = ssub.s32 %s18, 1
        // Predicated region
        $region13: #{tpu_custom_call.1} parent=11 // pred_check
          %p195 = pneg %p91
        $region14: #{tpu_custom_call.1} parent=11 // pred_check_branch
          %197 = sbr.rel (%p195) target = $region16
        $region15: #{tpu_custom_call.1} parent=11 // pred_region
          %s199 = ssub.s32 16384, 16384
          %200 = vsyncadd [#allocation3], %s199
          %s201 = sshll.u32 [#allocation2], 4
          %s202 = int_to_ptr.vmem [resolvable:$true] %s201
          %207 = dma.hbm_to_vmem [thread:$0]  %s2, 16384, %s202, [#allocation3], 128, 128, 8
        $region16: #{tpu_custom_call.1} parent=11 // pred_fallthru
          _
        // Predicated region
        $region17: #{tpu_custom_call.1} parent=11 // pred_check
          %p208 = pneg %p112
        $region18: #{tpu_custom_call.1} parent=11 // pred_check_branch
          %210 = sbr.rel (%p208) target = $region20
        $region19: #{tpu_custom_call.1} parent=11 // pred_region
          %s212 = ssub.s32 8192, 8192
          %213 = vsyncadd [#allocation6], %s212
          %s214 = sshll.u32 [#allocation5], 4
          %s215 = int_to_ptr.vmem [resolvable:$true] %s214
          %220 = dma.hbm_to_vmem [thread:$0]  %s3, 8192, %s215, [#allocation6], 64, 64, 4
        $region20: #{tpu_custom_call.1} parent=11 // pred_fallthru
          _
        // Predicated region
        $region21: #{tpu_custom_call.1} parent=11 // pred_check
          %p221 = pneg %p133
        $region22: #{tpu_custom_call.1} parent=11 // pred_check_branch
          %223 = sbr.rel (%p221) target = $region24
        $region23: #{tpu_custom_call.1} parent=11 // pred_region
          %s225 = ssub.s32 4096, 4096
          %226 = vsyncadd [#allocation6], %s225
          %s227 = sshll.u32 [#allocation7], 4
          %s228 = int_to_ptr.vmem [resolvable:$true] %s227
          %233 = dma.hbm_to_vmem [thread:$0]  %s4, 4096, %s228, [#allocation6], 256, 256, 16
        $region24: #{tpu_custom_call.1} parent=11 // pred_fallthru
          _
        // Predicated region
        $region25: #{tpu_custom_call.1} parent=11 // pred_check
          %p234 = pneg %p154
        $region26: #{tpu_custom_call.1} parent=11 // pred_check_branch
          %236 = sbr.rel (%p234) target = $region28
        $region27: #{tpu_custom_call.1} parent=11 // pred_region
          %s238 = ssub.s32 2048, 2048
          %239 = vsyncadd [#allocation9], %s238
          %s240 = sshll.u32 [#allocation8], 4
          %s241 = int_to_ptr.vmem [resolvable:$true] %s240
          %246 = dma.hbm_to_vmem [thread:$0]  %s5, 2048, %s241, [#allocation9], 64, 64, 4
        $region28: #{tpu_custom_call.1} parent=11 // pred_fallthru
          _
      $region12: #{tpu_custom_call.1} parent=5 // pred_fallthru
        _
      %p247 = scmp.lt.s32.totalorder %s18, 2
      // Predicated region
      $region29: #{tpu_custom_call.1} parent=5 // pred_check
        %p248 = pneg %p247
      $region30: #{tpu_custom_call.1} parent=5 // pred_check_branch
        %250 = sbr.rel (%p248) target = $region32
      $region31: #{tpu_custom_call.1} parent=5 // pred_region
        // Predicated region
        $region33: #{tpu_custom_call.1} parent=31 // pred_check
          %p251 = pneg %p38
        $region34: #{tpu_custom_call.1} parent=31 // pred_check_branch
          %253 = sbr.rel (%p251) target = $region36
        $region35: #{tpu_custom_call.1} parent=31 // pred_region
          %s254 = smul.u32 2, %s18
          %p255 = scmp.lt.s32.totalorder %s254, 3
          %s256 = scalar_select %p255, %s254, 3
          %s257 = smul.addr %s256, 8
          %s258 = scalar_lea.vmem %s0, %s257
          %s259 = smul.u32 2, %s18
        $region36: #{tpu_custom_call.1} parent=31 // pred_fallthru
          _
        // Predicated region
        $region37: #{tpu_custom_call.1} parent=31 // pred_check
          %p260 = pneg %p64
        $region38: #{tpu_custom_call.1} parent=31 // pred_check_branch
          %262 = sbr.rel (%p260) target = $region40
        $region39: #{tpu_custom_call.1} parent=31 // pred_region
          %s263 = smul.u32 2, %s18
          %p264 = scmp.lt.s32.totalorder %s263, 3
          %s265 = scalar_select %p264, %s263, 3
          %s266 = smul.addr %s265, 4
          %s267 = scalar_lea.vmem %s1, %s266
          %s268 = smul.u32 2, %s18
        $region40: #{tpu_custom_call.1} parent=31 // pred_fallthru
          _
      $region32: #{tpu_custom_call.1} parent=5 // pred_fallthru
        _
      %p269 = scmp.le.s32.totalorder 1, %s18
      %p270 = scmp.lt.s32.totalorder %s18, 3
      %p271 = pnand %p269, %p270
      %p272 = pneg %p271
      // Predicated region
      $region41: #{tpu_custom_call.1} parent=5 // pred_check
        _
      $region42: #{tpu_custom_call.1} parent=5 // pred_check_branch
        %274 = sbr.rel (%p271) target = $region44
      $region43: #{tpu_custom_call.1} parent=5 // pred_region
        %s275 = ssub.s32 %s18, 1
        // Predicated region
        $region45: #{tpu_custom_call.1} parent=43 // pred_check
          %p276 = pneg %p91
        $region46: #{tpu_custom_call.1} parent=43 // pred_check_branch
          %278 = sbr.rel (%p276) target = $region48
        $region47: #{tpu_custom_call.1} parent=43 // pred_region
          %279 = dma.done [#allocation3], 16384
        $region48: #{tpu_custom_call.1} parent=43 // pred_fallthru
          _
        // Predicated region
        $region49: #{tpu_custom_call.1} parent=43 // pred_check
          %p280 = pneg %p112
        $region50: #{tpu_custom_call.1} parent=43 // pred_check_branch
          %282 = sbr.rel (%p280) target = $region52
        $region51: #{tpu_custom_call.1} parent=43 // pred_region
          %283 = dma.done [#allocation6], 8192
        $region52: #{tpu_custom_call.1} parent=43 // pred_fallthru
          _
        // Predicated region
        $region53: #{tpu_custom_call.1} parent=43 // pred_check
          %p284 = pneg %p133
        $region54: #{tpu_custom_call.1} parent=43 // pred_check_branch
          %286 = sbr.rel (%p284) target = $region56
        $region55: #{tpu_custom_call.1} parent=43 // pred_region
          %287 = dma.done [#allocation6], 4096
        $region56: #{tpu_custom_call.1} parent=43 // pred_fallthru
          _
        // Predicated region
        $region57: #{tpu_custom_call.1} parent=43 // pred_check
          %p288 = pneg %p154
        $region58: #{tpu_custom_call.1} parent=43 // pred_check_branch
          %290 = sbr.rel (%p288) target = $region60
        $region59: #{tpu_custom_call.1} parent=43 // pred_region
          %291 = dma.done [#allocation9], 2048
        $region60: #{tpu_custom_call.1} parent=43 // pred_fallthru
          _
        %s292 = smul.u32 2, %s23
        %p293 = scmp.lt.s32.totalorder %s292, 3
        %s294 = scalar_select %p293, %s292, 3
        %s295 = smul.addr %s294, 8
        %s296 = scalar_lea.vmem %s0, %s295
        %p297 = pneg %p44
        %p298 = pneg %p41
        %s299 = smul.u32 2, %s23
        %p300 = scmp.lt.s32.totalorder %s299, 3
        %s301 = scalar_select %p300, %s299, 3
        %s302 = smul.addr %s301, 4
        %s303 = scalar_lea.vmem %s1, %s302
        %p304 = pneg %p70
        %p305 = pneg %p67
        %p306 = pneg %p91
        %p307 = pneg %p88
        %p308 = pneg %p112
        %p309 = pneg %p109
        %p310 = pneg %p133
        %p311 = pneg %p130
        %p312 = pneg %p154
        %p313 = pneg %p151
        %p314 = pneg %p180
        %p315 = pneg %p177
        %s316 = sand.u32 %s167, 1
        %s317 = scalar_lea.sflag [#allocation4], %s316
        %s318 = sand.u32 %s167, 1
        %s319 = smul.addr %s318, 16
        %s320 = scalar_lea.vmem [#allocation10], %s319
        %s321 = smul.u32 2, %s23
        %p322 = scmp.lt.s32.totalorder %s321, 3
        %s323 = scalar_select %p322, %s321, 3
        %s324 = smul.addr %s323, 8
        %s325 = scalar_lea.vmem %s0, %s324
        %s326 = smul.u32 2, %s23
        %s327 = smul.u32 2, %s23
        %p328 = scmp.lt.s32.totalorder %s327, 3
        %s329 = scalar_select %p328, %s327, 3
        %s330 = smul.addr %s329, 4
        %s331 = scalar_lea.vmem %s1, %s330
        %s332 = smul.u32 2, %s23
        %s333 = smul.u32 2, %s23
        %v335 = vld [vmem:[%s331] sm:$0xf]
        %v336 = vld [vmem:[%s331 + $0x4] sm:$0xf]
        %v337 = vld [vmem:[%s325] sm:$0xff]
        %v338 = vld [vmem:[%s325 + $0x8] sm:$0xff]
        %v339 = vld [vmem:[#allocation7] sm:$0xff]
        %v340 = vld [vmem:[#allocation7 + $0x8] sm:$0xff]
        %v341 = vld [vmem:[#allocation7 + $0x10] sm:$0xff]
        %v342 = vld [vmem:[#allocation7 + $0x18] sm:$0xff]
        %v343 = vld [vmem:[#allocation7 + $0x20] sm:$0xff]
        %v344 = vld [vmem:[#allocation7 + $0x28] sm:$0xff]
        %v345 = vld [vmem:[#allocation7 + $0x30] sm:$0xff]
        %v346 = vld [vmem:[#allocation7 + $0x38] sm:$0xff]
        %v347 = vld [vmem:[#allocation7 + $0x40] sm:$0xff]
        %v348 = vld [vmem:[#allocation7 + $0x48] sm:$0xff]
        %v349 = vld [vmem:[#allocation7 + $0x50] sm:$0xff]
        %v350 = vld [vmem:[#allocation7 + $0x58] sm:$0xff]
        %v351 = vld [vmem:[#allocation7 + $0x60] sm:$0xff]
        %v352 = vld [vmem:[#allocation7 + $0x68] sm:$0xff]
        %v353 = vld [vmem:[#allocation7 + $0x70] sm:$0xff]
        %v354 = vld [vmem:[#allocation7 + $0x78] sm:$0xff]
        %v355 = vld [vmem:[#allocation7 + $0x80] sm:$0xff]
        %v356 = vld [vmem:[#allocation7 + $0x88] sm:$0xff]
        %v357 = vld [vmem:[#allocation7 + $0x90] sm:$0xff]
        %v358 = vld [vmem:[#allocation7 + $0x98] sm:$0xff]
        %v359 = vld [vmem:[#allocation7 + $0xa0] sm:$0xff]
        %v360 = vld [vmem:[#allocation7 + $0xa8] sm:$0xff]
        %v361 = vld [vmem:[#allocation7 + $0xb0] sm:$0xff]
        %v362 = vld [vmem:[#allocation7 + $0xb8] sm:$0xff]
        %v363 = vld [vmem:[#allocation7 + $0xc0] sm:$0xff]
        %v364 = vld [vmem:[#allocation7 + $0xc8] sm:$0xff]
        %v365 = vld [vmem:[#allocation7 + $0xd0] sm:$0xff]
        %v366 = vld [vmem:[#allocation7 + $0xd8] sm:$0xff]
        %v367 = vld [vmem:[#allocation7 + $0xe0] sm:$0xff]
        %v368 = vld [vmem:[#allocation7 + $0xe8] sm:$0xff]
        %v369 = vld [vmem:[#allocation7 + $0xf0] sm:$0xff]
        %v370 = vld [vmem:[#allocation7 + $0xf8] sm:$0xff]
        %v373 = vunpack.c.l.b16 %v335
        %v374 = vunpack.c.l.b16 %v336
        %v375 = vpack.c.b16 %v374, %v373
        %v409 = vunpack.c.l.b16 %v339
        %v410 = vunpack.c.h.b16 %v339
        %v411 = vunpack.c.l.b16 %v340
        %v412 = vunpack.c.h.b16 %v340
        %v413 = vunpack.c.l.b16 %v341
        %v414 = vunpack.c.h.b16 %v341
        %v415 = vunpack.c.l.b16 %v342
        %v416 = vunpack.c.h.b16 %v342
        %v417 = vunpack.c.l.b16 %v343
        %v418 = vunpack.c.h.b16 %v343
        %v419 = vunpack.c.l.b16 %v344
        %v420 = vunpack.c.h.b16 %v344
        %v421 = vunpack.c.l.b16 %v345
        %v422 = vunpack.c.h.b16 %v345
        %v423 = vunpack.c.l.b16 %v346
        %v424 = vunpack.c.h.b16 %v346
        %v425 = vunpack.c.l.b16 %v347
        %v426 = vunpack.c.h.b16 %v347
        %v427 = vunpack.c.l.b16 %v348
        %v428 = vunpack.c.h.b16 %v348
        %v429 = vunpack.c.l.b16 %v349
        %v430 = vunpack.c.h.b16 %v349
        %v431 = vunpack.c.l.b16 %v350
        %v432 = vunpack.c.h.b16 %v350
        %v433 = vunpack.c.l.b16 %v351
        %v434 = vunpack.c.h.b16 %v351
        %v435 = vunpack.c.l.b16 %v352
        %v436 = vunpack.c.h.b16 %v352
        %v437 = vunpack.c.l.b16 %v353
        %v438 = vunpack.c.h.b16 %v353
        %v439 = vunpack.c.l.b16 %v354
        %v440 = vunpack.c.h.b16 %v354
        %v441 = vunpack.c.l.b16 %v355
        %v442 = vunpack.c.h.b16 %v355
        %v443 = vunpack.c.l.b16 %v356
        %v444 = vunpack.c.h.b16 %v356
        %v445 = vunpack.c.l.b16 %v357
        %v446 = vunpack.c.h.b16 %v357
        %v447 = vunpack.c.l.b16 %v358
        %v448 = vunpack.c.h.b16 %v358
        %v449 = vunpack.c.l.b16 %v359
        %v450 = vunpack.c.h.b16 %v359
        %v451 = vunpack.c.l.b16 %v360
        %v452 = vunpack.c.h.b16 %v360
        %v453 = vunpack.c.l.b16 %v361
        %v454 = vunpack.c.h.b16 %v361
        %v455 = vunpack.c.l.b16 %v362
        %v456 = vunpack.c.h.b16 %v362
        %v457 = vunpack.c.l.b16 %v363
        %v458 = vunpack.c.h.b16 %v363
        %v459 = vunpack.c.l.b16 %v364
        %v460 = vunpack.c.h.b16 %v364
        %v461 = vunpack.c.l.b16 %v365
        %v462 = vunpack.c.h.b16 %v365
        %v463 = vunpack.c.l.b16 %v366
        %v464 = vunpack.c.h.b16 %v366
        %v465 = vunpack.c.l.b16 %v367
        %v466 = vunpack.c.h.b16 %v367
        %v467 = vunpack.c.l.b16 %v368
        %v468 = vunpack.c.h.b16 %v368
        %v469 = vunpack.c.l.b16 %v369
        %v470 = vunpack.c.h.b16 %v369
        %v471 = vunpack.c.l.b16 %v370
        %v472 = vunpack.c.h.b16 %v370
        %v473 = vpack.c.b16 %v413, %v409
        %v474 = vpack.c.b16 %v414, %v410
        %v475 = vpack.c.b16 %v415, %v411
        %v476 = vpack.c.b16 %v416, %v412
        %v477 = vpack.c.b16 %v421, %v417
        %v478 = vpack.c.b16 %v422, %v418
        %v479 = vpack.c.b16 %v423, %v419
        %v480 = vpack.c.b16 %v424, %v420
        %v481 = vpack.c.b16 %v429, %v425
        %v482 = vpack.c.b16 %v430, %v426
        %v483 = vpack.c.b16 %v431, %v427
        %v484 = vpack.c.b16 %v432, %v428
        %v485 = vpack.c.b16 %v437, %v433
        %v486 = vpack.c.b16 %v438, %v434
        %v487 = vpack.c.b16 %v439, %v435
        %v488 = vpack.c.b16 %v440, %v436
        %v489 = vpack.c.b16 %v445, %v441
        %v490 = vpack.c.b16 %v446, %v442
        %v491 = vpack.c.b16 %v447, %v443
        %v492 = vpack.c.b16 %v448, %v444
        %v493 = vpack.c.b16 %v453, %v449
        %v494 = vpack.c.b16 %v454, %v450
        %v495 = vpack.c.b16 %v455, %v451
        %v496 = vpack.c.b16 %v456, %v452
        %v497 = vpack.c.b16 %v461, %v457
        %v498 = vpack.c.b16 %v462, %v458
        %v499 = vpack.c.b16 %v463, %v459
        %v500 = vpack.c.b16 %v464, %v460
        %v501 = vpack.c.b16 %v469, %v465
        %v502 = vpack.c.b16 %v470, %v466
        %v503 = vpack.c.b16 %v471, %v467
        %v504 = vpack.c.b16 %v472, %v468
        %537 = vmatprep.subr.bf16.mxu0 %v502
        %538 = vmatpush1.bf16.msra.mxu0 %v501
        %539 = vmatprep.subr.bf16.mxu0 %v498
        %540 = vmatpush1.bf16.msra.mxu0 %v497
        %541 = vmatprep.subr.bf16.mxu0 %v494
        %542 = vmatpush1.bf16.msra.mxu0 %v493
        %543 = vmatprep.subr.bf16.mxu0 %v490
        %544 = vmatpush1.bf16.msra.mxu0 %v489
        %545 = vmatprep.subr.bf16.mxu0 %v486
        %546 = vmatpush1.bf16.msra.mxu0 %v485
        %547 = vmatprep.subr.bf16.mxu0 %v482
        %548 = vmatpush1.bf16.msra.mxu0 %v481
        %549 = vmatprep.subr.bf16.mxu0 %v478
        %550 = vmatpush1.bf16.msra.mxu0 %v477
        %551 = vmatprep.subr.bf16.mxu0 %v474
        %552 = vmatpush1.bf16.msra.mxu0 %v473
        %553 = vmatprep.subr.bf16.mxu0 0
        %554 = vmatpush2.bf16.msra.mxu0 0
        %555 = vmatprep.subr.bf16.mxu0 0
        %556 = vmatpush2.bf16.msra.mxu0 0
        %557 = vmatprep.subr.bf16.mxu0 0
        %558 = vmatpush2.bf16.msra.mxu0 0
        %559 = vmatprep.subr.bf16.mxu0 0
        %560 = vmatpush2.bf16.msra.mxu0 0
        %561 = vmatprep.subr.bf16.mxu0 0
        %562 = vmatpush2.bf16.msra.mxu0 0
        %563 = vmatprep.subr.bf16.mxu0 0
        %564 = vmatpush2.bf16.msra.mxu0 0
        %565 = vmatprep.subr.bf16.mxu0 0
        %566 = vmatpush2.bf16.msra.mxu0 0
        %567 = vmatprep.subr.bf16.mxu0 0
        %568 = vmatpush2.bf16.msra.mxu0 0
        %569 = vmatprep.mubr.bf16.mxu0 0
        %570 = vmatmul.mubr.bf16.gmra.mxu0 %v375
        %v571 = vpop.f32.mrf.mxu0
        %v572 = vadd.f32 0.0, %v571
        %v573 = vpop.f32.mrf.mxu0
        %v574 = vadd.f32 0.0, %v573
        %v575 = vpop.f32.mrf.mxu0
        %v576 = vadd.f32 0.0, %v575
        %v577 = vpop.f32.mrf.mxu0
        %v578 = vadd.f32 0.0, %v577
        %579 = vdwg.mxu0
        %580 = vmatprep.subr.bf16.mxu0 %v504
        %581 = vmatpush1.bf16.msra.mxu0 %v503
        %582 = vmatprep.subr.bf16.mxu0 %v500
        %583 = vmatpush1.bf16.msra.mxu0 %v499
        %584 = vmatprep.subr.bf16.mxu0 %v496
        %585 = vmatpush1.bf16.msra.mxu0 %v495
        %586 = vmatprep.subr.bf16.mxu0 %v492
        %587 = vmatpush1.bf16.msra.mxu0 %v491
        %588 = vmatprep.subr.bf16.mxu0 %v488
        %589 = vmatpush1.bf16.msra.mxu0 %v487
        %590 = vmatprep.subr.bf16.mxu0 %v484
        %591 = vmatpush1.bf16.msra.mxu0 %v483
        %592 = vmatprep.subr.bf16.mxu0 %v480
        %593 = vmatpush1.bf16.msra.mxu0 %v479
        %594 = vmatprep.subr.bf16.mxu0 %v476
        %595 = vmatpush1.bf16.msra.mxu0 %v475
        %596 = vmatprep.subr.bf16.mxu0 0
        %597 = vmatpush2.bf16.msra.mxu0 0
        %598 = vmatprep.subr.bf16.mxu0 0
        %599 = vmatpush2.bf16.msra.mxu0 0
        %600 = vmatprep.subr.bf16.mxu0 0
        %601 = vmatpush2.bf16.msra.mxu0 0
        %602 = vmatprep.subr.bf16.mxu0 0
        %603 = vmatpush2.bf16.msra.mxu0 0
        %604 = vmatprep.subr.bf16.mxu0 0
        %605 = vmatpush2.bf16.msra.mxu0 0
        %606 = vmatprep.subr.bf16.mxu0 0
        %607 = vmatpush2.bf16.msra.mxu0 0
        %608 = vmatprep.subr.bf16.mxu0 0
        %609 = vmatpush2.bf16.msra.mxu0 0
        %610 = vmatprep.subr.bf16.mxu0 0
        %611 = vmatpush2.bf16.msra.mxu0 0
        %612 = vmatprep.mubr.bf16.mxu0 0
        %613 = vmatmul.mubr.bf16.gmra.mxu0 %v375
        %v614 = vpop.f32.mrf.mxu0
        %v615 = vadd.f32 0.0, %v614
        %v616 = vpop.f32.mrf.mxu0
        %v617 = vadd.f32 0.0, %v616
        %v618 = vpop.f32.mrf.mxu0
        %v619 = vadd.f32 0.0, %v618
        %v620 = vpop.f32.mrf.mxu0
        %v621 = vadd.f32 0.0, %v620
        %622 = vdwg.mxu0
        %v623 = vxor.u32 %v572, 2147483648
        %v624 = vxor.u32 %v574, 2147483648
        %v625 = vxor.u32 %v576, 2147483648
        %v626 = vxor.u32 %v578, 2147483648
        %v627 = vmul.f32 %v623, 1.442695
        %v628 = vpow.pop %v627
        %v629 = vmul.f32 %v624, 1.442695
        %v630 = vpow.pop %v629
        %v631 = vmul.f32 %v625, 1.442695
        %v632 = vpow.pop %v631
        %v633 = vmul.f32 %v626, 1.442695
        %v634 = vpow.pop %v633
        %v635 = vadd.f32 %v628, 1.0
        %v636 = vadd.f32 %v630, 1.0
        %v637 = vadd.f32 %v632, 1.0
        %v638 = vadd.f32 %v634, 1.0
        %v639 = vrcp.pop %v635
        %v640 = vmul.f32 1.0, %v639
        %v641 = vrcp.pop %v636
        %v642 = vmul.f32 1.0, %v641
        %v643 = vrcp.pop %v637
        %v644 = vmul.f32 1.0, %v643
        %v645 = vrcp.pop %v638
        %v646 = vmul.f32 1.0, %v645
        %v647 = vmul.f32 %v572, %v640
        %v648 = vmul.f32 %v574, %v642
        %v649 = vmul.f32 %v576, %v644
        %v650 = vmul.f32 %v578, %v646
        %v651 = vmul.f32 %v647, %v615
        %v652 = vmul.f32 %v648, %v617
        %v653 = vmul.f32 %v649, %v619
        %v654 = vmul.f32 %v650, %v621
        %v655 = vpack.c.bf16 %v653, %v651
        %v656 = vpack.c.bf16 %v654, %v652
        %v657 = vld [vmem:[#allocation8] sm:$0xf]
        %v658 = vld [vmem:[#allocation8 + $0x4] sm:$0xf]
        %v659 = vld [vmem:[#allocation8 + $0x8] sm:$0xf]
        %v660 = vld [vmem:[#allocation8 + $0xc] sm:$0xf]
        %v661 = vld [vmem:[#allocation8 + $0x10] sm:$0xf]
        %v662 = vld [vmem:[#allocation8 + $0x14] sm:$0xf]
        %v663 = vld [vmem:[#allocation8 + $0x18] sm:$0xf]
        %v664 = vld [vmem:[#allocation8 + $0x1c] sm:$0xf]
        %v665 = vld [vmem:[#allocation8 + $0x20] sm:$0xf]
        %v666 = vld [vmem:[#allocation8 + $0x24] sm:$0xf]
        %v667 = vld [vmem:[#allocation8 + $0x28] sm:$0xf]
        %v668 = vld [vmem:[#allocation8 + $0x2c] sm:$0xf]
        %v669 = vld [vmem:[#allocation8 + $0x30] sm:$0xf]
        %v670 = vld [vmem:[#allocation8 + $0x34] sm:$0xf]
        %v671 = vld [vmem:[#allocation8 + $0x38] sm:$0xf]
        %v672 = vld [vmem:[#allocation8 + $0x3c] sm:$0xf]
        %v673 = vld [vmem:[#allocation8 + $0x40] sm:$0xf]
        %v674 = vld [vmem:[#allocation8 + $0x44] sm:$0xf]
        %v675 = vld [vmem:[#allocation8 + $0x48] sm:$0xf]
        %v676 = vld [vmem:[#allocation8 + $0x4c] sm:$0xf]
        %v677 = vld [vmem:[#allocation8 + $0x50] sm:$0xf]
        %v678 = vld [vmem:[#allocation8 + $0x54] sm:$0xf]
        %v679 = vld [vmem:[#allocation8 + $0x58] sm:$0xf]
        %v680 = vld [vmem:[#allocation8 + $0x5c] sm:$0xf]
        %v681 = vld [vmem:[#allocation8 + $0x60] sm:$0xf]
        %v682 = vld [vmem:[#allocation8 + $0x64] sm:$0xf]
        %v683 = vld [vmem:[#allocation8 + $0x68] sm:$0xf]
        %v684 = vld [vmem:[#allocation8 + $0x6c] sm:$0xf]
        %v685 = vld [vmem:[#allocation8 + $0x70] sm:$0xf]
        %v686 = vld [vmem:[#allocation8 + $0x74] sm:$0xf]
        %v687 = vld [vmem:[#allocation8 + $0x78] sm:$0xf]
        %v688 = vld [vmem:[#allocation8 + $0x7c] sm:$0xf]
        %v689 = vld [vmem:[#allocation2] sm:$0xff]
        %v690 = vld [vmem:[#allocation2 + $0x8] sm:$0xff]
        %v691 = vld [vmem:[#allocation2 + $0x10] sm:$0xff]
        %v692 = vld [vmem:[#allocation2 + $0x18] sm:$0xff]
        %v693 = vld [vmem:[#allocation2 + $0x20] sm:$0xff]
        %v694 = vld [vmem:[#allocation2 + $0x28] sm:$0xff]
        %v695 = vld [vmem:[#allocation2 + $0x30] sm:$0xff]
        %v696 = vld [vmem:[#allocation2 + $0x38] sm:$0xff]
        %v697 = vld [vmem:[#allocation2 + $0x40] sm:$0xff]
        %v698 = vld [vmem:[#allocation2 + $0x48] sm:$0xff]
        %v699 = vld [vmem:[#allocation2 + $0x50] sm:$0xff]
        %v700 = vld [vmem:[#allocation2 + $0x58] sm:$0xff]
        %v701 = vld [vmem:[#allocation2 + $0x60] sm:$0xff]
        %v702 = vld [vmem:[#allocation2 + $0x68] sm:$0xff]
        %v703 = vld [vmem:[#allocation2 + $0x70] sm:$0xff]
        %v704 = vld [vmem:[#allocation2 + $0x78] sm:$0xff]
        %v721 = vunpack.c.l.b16 %v689
        %v722 = vunpack.c.h.b16 %v689
        %v723 = vunpack.c.l.b16 %v690
        %v724 = vunpack.c.h.b16 %v690
        %v725 = vunpack.c.l.b16 %v691
        %v726 = vunpack.c.h.b16 %v691
        %v727 = vunpack.c.l.b16 %v692
        %v728 = vunpack.c.h.b16 %v692
        %v729 = vunpack.c.l.b16 %v693
        %v730 = vunpack.c.h.b16 %v693
        %v731 = vunpack.c.l.b16 %v694
        %v732 = vunpack.c.h.b16 %v694
        %v733 = vunpack.c.l.b16 %v695
        %v734 = vunpack.c.h.b16 %v695
        %v735 = vunpack.c.l.b16 %v696
        %v736 = vunpack.c.h.b16 %v696
        %v737 = vunpack.c.l.b16 %v697
        %v738 = vunpack.c.h.b16 %v697
        %v739 = vunpack.c.l.b16 %v698
        %v740 = vunpack.c.h.b16 %v698
        %v741 = vunpack.c.l.b16 %v699
        %v742 = vunpack.c.h.b16 %v699
        %v743 = vunpack.c.l.b16 %v700
        %v744 = vunpack.c.h.b16 %v700
        %v745 = vunpack.c.l.b16 %v701
        %v746 = vunpack.c.h.b16 %v701
        %v747 = vunpack.c.l.b16 %v702
        %v748 = vunpack.c.h.b16 %v702
        %v749 = vunpack.c.l.b16 %v703
        %v750 = vunpack.c.h.b16 %v703
        %v751 = vunpack.c.l.b16 %v704
        %v752 = vunpack.c.h.b16 %v704
        %v753 = vpack.c.b16 %v723, %v721
        %v754 = vpack.c.b16 %v724, %v722
        %v755 = vpack.c.b16 %v727, %v725
        %v756 = vpack.c.b16 %v728, %v726
        %v757 = vpack.c.b16 %v731, %v729
        %v758 = vpack.c.b16 %v732, %v730
        %v759 = vpack.c.b16 %v735, %v733
        %v760 = vpack.c.b16 %v736, %v734
        %v761 = vpack.c.b16 %v739, %v737
        %v762 = vpack.c.b16 %v740, %v738
        %v763 = vpack.c.b16 %v743, %v741
        %v764 = vpack.c.b16 %v744, %v742
        %v765 = vpack.c.b16 %v747, %v745
        %v766 = vpack.c.b16 %v748, %v746
        %v767 = vpack.c.b16 %v751, %v749
        %v768 = vpack.c.b16 %v752, %v750
        %785 = vmatprep.subr.bf16.mxu0 %v768
        %786 = vmatpush1.bf16.msra.mxu0 %v767
        %787 = vmatprep.subr.bf16.mxu0 %v766
        %788 = vmatpush1.bf16.msra.mxu0 %v765
        %789 = vmatprep.subr.bf16.mxu0 %v764
        %790 = vmatpush1.bf16.msra.mxu0 %v763
        %791 = vmatprep.subr.bf16.mxu0 %v762
        %792 = vmatpush1.bf16.msra.mxu0 %v761
        %793 = vmatprep.subr.bf16.mxu0 %v760
        %794 = vmatpush1.bf16.msra.mxu0 %v759
        %795 = vmatprep.subr.bf16.mxu0 %v758
        %796 = vmatpush1.bf16.msra.mxu0 %v757
        %797 = vmatprep.subr.bf16.mxu0 %v756
        %798 = vmatpush1.bf16.msra.mxu0 %v755
        %799 = vmatprep.subr.bf16.mxu0 %v754
        %800 = vmatpush1.bf16.msra.mxu0 %v753
        %801 = vmatprep.subr.bf16.mxu0 0
        %802 = vmatpush2.bf16.msra.mxu0 0
        %803 = vmatprep.subr.bf16.mxu0 0
        %804 = vmatpush2.bf16.msra.mxu0 0
        %805 = vmatprep.subr.bf16.mxu0 0
        %806 = vmatpush2.bf16.msra.mxu0 0
        %807 = vmatprep.subr.bf16.mxu0 0
        %808 = vmatpush2.bf16.msra.mxu0 0
        %809 = vmatprep.subr.bf16.mxu0 0
        %810 = vmatpush2.bf16.msra.mxu0 0
        %811 = vmatprep.subr.bf16.mxu0 0
        %812 = vmatpush2.bf16.msra.mxu0 0
        %813 = vmatprep.subr.bf16.mxu0 0
        %814 = vmatpush2.bf16.msra.mxu0 0
        %815 = vmatprep.subr.bf16.mxu0 0
        %816 = vmatpush2.bf16.msra.mxu0 0
        %817 = vmatprep.mubr.bf16.mxu0 0
        %818 = vmatmul.mubr.bf16.gmra.mxu0 %v375
        %v819 = vpop.f32.mrf.mxu0
        %v820 = vadd.f32 0.0, %v819
        %v821 = vpop.f32.mrf.mxu0
        %v822 = vadd.f32 0.0, %v821
        %v823 = vpop.f32.mrf.mxu0
        %v824 = vadd.f32 0.0, %v823
        %v825 = vpop.f32.mrf.mxu0
        %v826 = vadd.f32 0.0, %v825
        %827 = vdwg.mxu0
        %v828 = vxor.u32 %v820, 2147483648
        %v829 = vxor.u32 %v824, 2147483648
        %v830 = vmul.f32 %v828, 1.442695
        %v831 = vpow.pop %v830
        %v832 = vmul.f32 %v829, 1.442695
        %v833 = vpow.pop %v832
        %v834 = vadd.f32 %v831, 1.0
        %v835 = vadd.f32 %v833, 1.0
        %v836 = vrcp.pop %v834
        %v837 = vmul.f32 1.0, %v836
        %v838 = vrcp.pop %v835
        %v839 = vmul.f32 1.0, %v838
        %v840 = vmul.f32 %v820, %v837
        %v841 = vmul.f32 %v824, %v839
        %v842 = vmul.f32 %v840, %v822
        %v843 = vmul.f32 %v841, %v826
        %845 = vset.pattern.permute.xlu0 0
        %846 = vperm.xlu0 %845, %v337
        %v847 = vpop.permute.xlu0 %846
        %850 = vset.pattern.permute.xlu0 0
        %851 = vperm.xlu0 %850, %v338
        %v852 = vpop.permute.xlu0 %851
        %v854 = vmul.f32 %v842, %v847
        %v855 = vmul.f32 %v843, %v852
        %v856 = vpack.c.bf16 %v855, %v854
        %v857 = vld [vmem:[#allocation5] sm:$0xf]
        %v858 = vld [vmem:[#allocation5 + $0x4] sm:$0xf]
        %v859 = vld [vmem:[#allocation5 + $0x8] sm:$0xf]
        %v860 = vld [vmem:[#allocation5 + $0xc] sm:$0xf]
        %v861 = vld [vmem:[#allocation5 + $0x10] sm:$0xf]
        %v862 = vld [vmem:[#allocation5 + $0x14] sm:$0xf]
        %v863 = vld [vmem:[#allocation5 + $0x18] sm:$0xf]
        %v864 = vld [vmem:[#allocation5 + $0x1c] sm:$0xf]
        %v865 = vld [vmem:[#allocation5 + $0x20] sm:$0xf]
        %v866 = vld [vmem:[#allocation5 + $0x24] sm:$0xf]
        %v867 = vld [vmem:[#allocation5 + $0x28] sm:$0xf]
        %v868 = vld [vmem:[#allocation5 + $0x2c] sm:$0xf]
        %v869 = vld [vmem:[#allocation5 + $0x30] sm:$0xf]
        %v870 = vld [vmem:[#allocation5 + $0x34] sm:$0xf]
        %v871 = vld [vmem:[#allocation5 + $0x38] sm:$0xf]
        %v872 = vld [vmem:[#allocation5 + $0x3c] sm:$0xf]
        %v889 = vunpack.c.l.b16 %v857
        %v890 = vunpack.c.l.b16 %v858
        %v891 = vunpack.c.l.b16 %v859
        %v892 = vunpack.c.l.b16 %v860
        %v893 = vunpack.c.l.b16 %v861
        %v894 = vunpack.c.l.b16 %v862
        %v895 = vunpack.c.l.b16 %v863
        %v896 = vunpack.c.l.b16 %v864
        %v897 = vunpack.c.l.b16 %v865
        %v898 = vunpack.c.l.b16 %v866
        %v899 = vunpack.c.l.b16 %v867
        %v900 = vunpack.c.l.b16 %v868
        %v901 = vunpack.c.l.b16 %v869
        %v902 = vunpack.c.l.b16 %v870
        %v903 = vunpack.c.l.b16 %v871
        %v904 = vunpack.c.l.b16 %v872
        %v905 = vpack.c.b16 %v890, %v889
        %v906 = vpack.c.b16 %v892, %v891
        %v907 = vpack.c.b16 %v894, %v893
        %v908 = vpack.c.b16 %v896, %v895
        %v909 = vpack.c.b16 %v898, %v897
        %v910 = vpack.c.b16 %v900, %v899
        %v911 = vpack.c.b16 %v902, %v901
        %v912 = vpack.c.b16 %v904, %v903
        %921 = vmatprep.subr.bf16.mxu0 0
        %922 = vmatpush1.bf16.msra.mxu0 %v912
        %923 = vmatprep.subr.bf16.mxu0 0
        %924 = vmatpush1.bf16.msra.mxu0 %v911
        %925 = vmatprep.subr.bf16.mxu0 0
        %926 = vmatpush1.bf16.msra.mxu0 %v910
        %927 = vmatprep.subr.bf16.mxu0 0
        %928 = vmatpush1.bf16.msra.mxu0 %v909
        %929 = vmatprep.subr.bf16.mxu0 0
        %930 = vmatpush1.bf16.msra.mxu0 %v908
        %931 = vmatprep.subr.bf16.mxu0 0
        %932 = vmatpush1.bf16.msra.mxu0 %v907
        %933 = vmatprep.subr.bf16.mxu0 0
        %934 = vmatpush1.bf16.msra.mxu0 %v906
        %935 = vmatprep.subr.bf16.mxu0 0
        %936 = vmatpush1.bf16.msra.mxu0 %v905
        %937 = vmatprep.subr.bf16.mxu0 0
        %938 = vmatpush2.bf16.msra.mxu0 0
        %939 = vmatprep.subr.bf16.mxu0 0
        %940 = vmatpush2.bf16.msra.mxu0 0
        %941 = vmatprep.subr.bf16.mxu0 0
        %942 = vmatpush2.bf16.msra.mxu0 0
        %943 = vmatprep.subr.bf16.mxu0 0
        %944 = vmatpush2.bf16.msra.mxu0 0
        %945 = vmatprep.subr.bf16.mxu0 0
        %946 = vmatpush2.bf16.msra.mxu0 0
        %947 = vmatprep.subr.bf16.mxu0 0
        %948 = vmatpush2.bf16.msra.mxu0 0
        %949 = vmatprep.subr.bf16.mxu0 0
        %950 = vmatpush2.bf16.msra.mxu0 0
        %951 = vmatprep.subr.bf16.mxu0 0
        %952 = vmatpush2.bf16.msra.mxu0 0
        %953 = vmatprep.mubr.bf16.mxu0 0
        %954 = vmatmul.mubr.bf16.gmra.mxu0 %v856
        %v955 = vpop.f32.mrf.mxu0
        %v956 = vadd.f32 0.0, %v955
        %v957 = vpop.f32.mrf.mxu0
        %v958 = vpop.f32.mrf.mxu0
        %v959 = vadd.f32 0.0, %v958
        %v960 = vpop.f32.mrf.mxu0
        %961 = vdwg.mxu0
        %v994 = vunpack.c.l.b16 %v657
        %v995 = vunpack.c.l.b16 %v658
        %v996 = vunpack.c.l.b16 %v659
        %v997 = vunpack.c.l.b16 %v660
        %v998 = vunpack.c.l.b16 %v661
        %v999 = vunpack.c.l.b16 %v662
        %v1000 = vunpack.c.l.b16 %v663
        %v1001 = vunpack.c.l.b16 %v664
        %v1002 = vunpack.c.l.b16 %v665
        %v1003 = vunpack.c.l.b16 %v666
        %v1004 = vunpack.c.l.b16 %v667
        %v1005 = vunpack.c.l.b16 %v668
        %v1006 = vunpack.c.l.b16 %v669
        %v1007 = vunpack.c.l.b16 %v670
        %v1008 = vunpack.c.l.b16 %v671
        %v1009 = vunpack.c.l.b16 %v672
        %v1010 = vunpack.c.l.b16 %v673
        %v1011 = vunpack.c.l.b16 %v674
        %v1012 = vunpack.c.l.b16 %v675
        %v1013 = vunpack.c.l.b16 %v676
        %v1014 = vunpack.c.l.b16 %v677
        %v1015 = vunpack.c.l.b16 %v678
        %v1016 = vunpack.c.l.b16 %v679
        %v1017 = vunpack.c.l.b16 %v680
        %v1018 = vunpack.c.l.b16 %v681
        %v1019 = vunpack.c.l.b16 %v682
        %v1020 = vunpack.c.l.b16 %v683
        %v1021 = vunpack.c.l.b16 %v684
        %v1022 = vunpack.c.l.b16 %v685
        %v1023 = vunpack.c.l.b16 %v686
        %v1024 = vunpack.c.l.b16 %v687
        %v1025 = vunpack.c.l.b16 %v688
        %v1026 = vpack.c.b16 %v995, %v994
        %v1027 = vpack.c.b16 %v997, %v996
        %v1028 = vpack.c.b16 %v999, %v998
        %v1029 = vpack.c.b16 %v1001, %v1000
        %v1030 = vpack.c.b16 %v1003, %v1002
        %v1031 = vpack.c.b16 %v1005, %v1004
        %v1032 = vpack.c.b16 %v1007, %v1006
        %v1033 = vpack.c.b16 %v1009, %v1008
        %v1034 = vpack.c.b16 %v1011, %v1010
        %v1035 = vpack.c.b16 %v1013, %v1012
        %v1036 = vpack.c.b16 %v1015, %v1014
        %v1037 = vpack.c.b16 %v1017, %v1016
        %v1038 = vpack.c.b16 %v1019, %v1018
        %v1039 = vpack.c.b16 %v1021, %v1020
        %v1040 = vpack.c.b16 %v1023, %v1022
        %v1041 = vpack.c.b16 %v1025, %v1024
        %1058 = vmatprep.subr.bf16.mxu0 0
        %1059 = vmatpush1.bf16.msra.mxu0 %v1033
        %1060 = vmatprep.subr.bf16.mxu0 0
        %1061 = vmatpush1.bf16.msra.mxu0 %v1032
        %1062 = vmatprep.subr.bf16.mxu0 0
        %1063 = vmatpush1.bf16.msra.mxu0 %v1031
        %1064 = vmatprep.subr.bf16.mxu0 0
        %1065 = vmatpush1.bf16.msra.mxu0 %v1030
        %1066 = vmatprep.subr.bf16.mxu0 0
        %1067 = vmatpush1.bf16.msra.mxu0 %v1029
        %1068 = vmatprep.subr.bf16.mxu0 0
        %1069 = vmatpush1.bf16.msra.mxu0 %v1028
        %1070 = vmatprep.subr.bf16.mxu0 0
        %1071 = vmatpush1.bf16.msra.mxu0 %v1027
        %1072 = vmatprep.subr.bf16.mxu0 0
        %1073 = vmatpush1.bf16.msra.mxu0 %v1026
        %1074 = vmatprep.subr.bf16.mxu0 0
        %1075 = vmatpush2.bf16.msra.mxu0 %v1041
        %1076 = vmatprep.subr.bf16.mxu0 0
        %1077 = vmatpush2.bf16.msra.mxu0 %v1040
        %1078 = vmatprep.subr.bf16.mxu0 0
        %1079 = vmatpush2.bf16.msra.mxu0 %v1039
        %1080 = vmatprep.subr.bf16.mxu0 0
        %1081 = vmatpush2.bf16.msra.mxu0 %v1038
        %1082 = vmatprep.subr.bf16.mxu0 0
        %1083 = vmatpush2.bf16.msra.mxu0 %v1037
        %1084 = vmatprep.subr.bf16.mxu0 0
        %1085 = vmatpush2.bf16.msra.mxu0 %v1036
        %1086 = vmatprep.subr.bf16.mxu0 0
        %1087 = vmatpush2.bf16.msra.mxu0 %v1035
        %1088 = vmatprep.subr.bf16.mxu0 0
        %1089 = vmatpush2.bf16.msra.mxu0 %v1034
        %1090 = vmatprep.mubr.bf16.mxu0 %v656
        %1091 = vmatmul.mubr.bf16.gmra.mxu0 %v655
        %v1092 = vpop.f32.mrf.mxu0
        %v1093 = vadd.f32 %v956, %v1092
        %v1094 = vpop.f32.mrf.mxu0
        %v1095 = vpop.f32.mrf.mxu0
        %v1096 = vadd.f32 %v959, %v1095
        %v1097 = vpop.f32.mrf.mxu0
        %1098 = vdwg.mxu0
        %s1099 = scalar_lea.vmem [#allocation2], 128
        %v1100 = vld [vmem:[%s1099] sm:$0xff]
        %v1101 = vld [vmem:[%s1099 + $0x8] sm:$0xff]
        %v1102 = vld [vmem:[%s1099 + $0x10] sm:$0xff]
        %v1103 = vld [vmem:[%s1099 + $0x18] sm:$0xff]
        %v1104 = vld [vmem:[%s1099 + $0x20] sm:$0xff]
        %v1105 = vld [vmem:[%s1099 + $0x28] sm:$0xff]
        %v1106 = vld [vmem:[%s1099 + $0x30] sm:$0xff]
        %v1107 = vld [vmem:[%s1099 + $0x38] sm:$0xff]
        %v1108 = vld [vmem:[%s1099 + $0x40] sm:$0xff]
        %v1109 = vld [vmem:[%s1099 + $0x48] sm:$0xff]
        %v1110 = vld [vmem:[%s1099 + $0x50] sm:$0xff]
        %v1111 = vld [vmem:[%s1099 + $0x58] sm:$0xff]
        %v1112 = vld [vmem:[%s1099 + $0x60] sm:$0xff]
        %v1113 = vld [vmem:[%s1099 + $0x68] sm:$0xff]
        %v1114 = vld [vmem:[%s1099 + $0x70] sm:$0xff]
        %v1115 = vld [vmem:[%s1099 + $0x78] sm:$0xff]
        %v1132 = vunpack.c.l.b16 %v1100
        %v1133 = vunpack.c.h.b16 %v1100
        %v1134 = vunpack.c.l.b16 %v1101
        %v1135 = vunpack.c.h.b16 %v1101
        %v1136 = vunpack.c.l.b16 %v1102
        %v1137 = vunpack.c.h.b16 %v1102
        %v1138 = vunpack.c.l.b16 %v1103
        %v1139 = vunpack.c.h.b16 %v1103
        %v1140 = vunpack.c.l.b16 %v1104
        %v1141 = vunpack.c.h.b16 %v1104
        %v1142 = vunpack.c.l.b16 %v1105
        %v1143 = vunpack.c.h.b16 %v1105
        %v1144 = vunpack.c.l.b16 %v1106
        %v1145 = vunpack.c.h.b16 %v1106
        %v1146 = vunpack.c.l.b16 %v1107
        %v1147 = vunpack.c.h.b16 %v1107
        %v1148 = vunpack.c.l.b16 %v1108
        %v1149 = vunpack.c.h.b16 %v1108
        %v1150 = vunpack.c.l.b16 %v1109
        %v1151 = vunpack.c.h.b16 %v1109
        %v1152 = vunpack.c.l.b16 %v1110
        %v1153 = vunpack.c.h.b16 %v1110
        %v1154 = vunpack.c.l.b16 %v1111
        %v1155 = vunpack.c.h.b16 %v1111
        %v1156 = vunpack.c.l.b16 %v1112
        %v1157 = vunpack.c.h.b16 %v1112
        %v1158 = vunpack.c.l.b16 %v1113
        %v1159 = vunpack.c.h.b16 %v1113
        %v1160 = vunpack.c.l.b16 %v1114
        %v1161 = vunpack.c.h.b16 %v1114
        %v1162 = vunpack.c.l.b16 %v1115
        %v1163 = vunpack.c.h.b16 %v1115
        %v1164 = vpack.c.b16 %v1134, %v1132
        %v1165 = vpack.c.b16 %v1135, %v1133
        %v1166 = vpack.c.b16 %v1138, %v1136
        %v1167 = vpack.c.b16 %v1139, %v1137
        %v1168 = vpack.c.b16 %v1142, %v1140
        %v1169 = vpack.c.b16 %v1143, %v1141
        %v1170 = vpack.c.b16 %v1146, %v1144
        %v1171 = vpack.c.b16 %v1147, %v1145
        %v1172 = vpack.c.b16 %v1150, %v1148
        %v1173 = vpack.c.b16 %v1151, %v1149
        %v1174 = vpack.c.b16 %v1154, %v1152
        %v1175 = vpack.c.b16 %v1155, %v1153
        %v1176 = vpack.c.b16 %v1158, %v1156
        %v1177 = vpack.c.b16 %v1159, %v1157
        %v1178 = vpack.c.b16 %v1162, %v1160
        %v1179 = vpack.c.b16 %v1163, %v1161
        %1196 = vmatprep.subr.bf16.mxu0 %v1179
        %1197 = vmatpush1.bf16.msra.mxu0 %v1178
        %1198 = vmatprep.subr.bf16.mxu0 %v1177
        %1199 = vmatpush1.bf16.msra.mxu0 %v1176
        %1200 = vmatprep.subr.bf16.mxu0 %v1175
        %1201 = vmatpush1.bf16.msra.mxu0 %v1174
        %1202 = vmatprep.subr.bf16.mxu0 %v1173
        %1203 = vmatpush1.bf16.msra.mxu0 %v1172
        %1204 = vmatprep.subr.bf16.mxu0 %v1171
        %1205 = vmatpush1.bf16.msra.mxu0 %v1170
        %1206 = vmatprep.subr.bf16.mxu0 %v1169
        %1207 = vmatpush1.bf16.msra.mxu0 %v1168
        %1208 = vmatprep.subr.bf16.mxu0 %v1167
        %1209 = vmatpush1.bf16.msra.mxu0 %v1166
        %1210 = vmatprep.subr.bf16.mxu0 %v1165
        %1211 = vmatpush1.bf16.msra.mxu0 %v1164
        %1212 = vmatprep.subr.bf16.mxu0 0
        %1213 = vmatpush2.bf16.msra.mxu0 0
        %1214 = vmatprep.subr.bf16.mxu0 0
        %1215 = vmatpush2.bf16.msra.mxu0 0
        %1216 = vmatprep.subr.bf16.mxu0 0
        %1217 = vmatpush2.bf16.msra.mxu0 0
        %1218 = vmatprep.subr.bf16.mxu0 0
        %1219 = vmatpush2.bf16.msra.mxu0 0
        %1220 = vmatprep.subr.bf16.mxu0 0
        %1221 = vmatpush2.bf16.msra.mxu0 0
        %1222 = vmatprep.subr.bf16.mxu0 0
        %1223 = vmatpush2.bf16.msra.mxu0 0
        %1224 = vmatprep.subr.bf16.mxu0 0
        %1225 = vmatpush2.bf16.msra.mxu0 0
        %1226 = vmatprep.subr.bf16.mxu0 0
        %1227 = vmatpush2.bf16.msra.mxu0 0
        %1228 = vmatprep.mubr.bf16.mxu0 0
        %1229 = vmatmul.mubr.bf16.gmra.mxu0 %v375
        %v1230 = vpop.f32.mrf.mxu0
        %v1231 = vadd.f32 0.0, %v1230
        %v1232 = vpop.f32.mrf.mxu0
        %v1233 = vadd.f32 0.0, %v1232
        %v1234 = vpop.f32.mrf.mxu0
        %v1235 = vadd.f32 0.0, %v1234
        %v1236 = vpop.f32.mrf.mxu0
        %v1237 = vadd.f32 0.0, %v1236
        %1238 = vdwg.mxu0
        %v1239 = vxor.u32 %v1231, 2147483648
        %v1240 = vxor.u32 %v1235, 2147483648
        %v1241 = vmul.f32 %v1239, 1.442695
        %v1242 = vpow.pop %v1241
        %v1243 = vmul.f32 %v1240, 1.442695
        %v1244 = vpow.pop %v1243
        %v1245 = vadd.f32 %v1242, 1.0
        %v1246 = vadd.f32 %v1244, 1.0
        %v1247 = vrcp.pop %v1245
        %v1248 = vmul.f32 1.0, %v1247
        %v1249 = vrcp.pop %v1246
        %v1250 = vmul.f32 1.0, %v1249
        %v1251 = vmul.f32 %v1231, %v1248
        %v1252 = vmul.f32 %v1235, %v1250
        %v1253 = vmul.f32 %v1251, %v1233
        %v1254 = vmul.f32 %v1252, %v1237
        %1255 = vset.pattern.permute.xlu0 1
        %1256 = vperm.xlu0 %1255, %v337
        %v1257 = vpop.permute.xlu0 %1256
        %1259 = vset.pattern.permute.xlu0 1
        %1260 = vperm.xlu0 %1259, %v338
        %v1261 = vpop.permute.xlu0 %1260
        %v1263 = vmul.f32 %v1253, %v1257
        %v1264 = vmul.f32 %v1254, %v1261
        %v1265 = vpack.c.bf16 %v1264, %v1263
        %s1266 = scalar_lea.vmem [#allocation5], 64
        %v1267 = vld [vmem:[%s1266] sm:$0xf]
        %v1268 = vld [vmem:[%s1266 + $0x4] sm:$0xf]
        %v1269 = vld [vmem:[%s1266 + $0x8] sm:$0xf]
        %v1270 = vld [vmem:[%s1266 + $0xc] sm:$0xf]
        %v1271 = vld [vmem:[%s1266 + $0x10] sm:$0xf]
        %v1272 = vld [vmem:[%s1266 + $0x14] sm:$0xf]
        %v1273 = vld [vmem:[%s1266 + $0x18] sm:$0xf]
        %v1274 = vld [vmem:[%s1266 + $0x1c] sm:$0xf]
        %v1275 = vld [vmem:[%s1266 + $0x20] sm:$0xf]
        %v1276 = vld [vmem:[%s1266 + $0x24] sm:$0xf]
        %v1277 = vld [vmem:[%s1266 + $0x28] sm:$0xf]
        %v1278 = vld [vmem:[%s1266 + $0x2c] sm:$0xf]
        %v1279 = vld [vmem:[%s1266 + $0x30] sm:$0xf]
        %v1280 = vld [vmem:[%s1266 + $0x34] sm:$0xf]
        %v1281 = vld [vmem:[%s1266 + $0x38] sm:$0xf]
        %v1282 = vld [vmem:[%s1266 + $0x3c] sm:$0xf]
        %v1299 = vunpack.c.l.b16 %v1267
        %v1300 = vunpack.c.l.b16 %v1268
        %v1301 = vunpack.c.l.b16 %v1269
        %v1302 = vunpack.c.l.b16 %v1270
        %v1303 = vunpack.c.l.b16 %v1271
        %v1304 = vunpack.c.l.b16 %v1272
        %v1305 = vunpack.c.l.b16 %v1273
        %v1306 = vunpack.c.l.b16 %v1274
        %v1307 = vunpack.c.l.b16 %v1275
        %v1308 = vunpack.c.l.b16 %v1276
        %v1309 = vunpack.c.l.b16 %v1277
        %v1310 = vunpack.c.l.b16 %v1278
        %v1311 = vunpack.c.l.b16 %v1279
        %v1312 = vunpack.c.l.b16 %v1280
        %v1313 = vunpack.c.l.b16 %v1281
        %v1314 = vunpack.c.l.b16 %v1282
        %v1315 = vpack.c.b16 %v1300, %v1299
        %v1316 = vpack.c.b16 %v1302, %v1301
        %v1317 = vpack.c.b16 %v1304, %v1303
        %v1318 = vpack.c.b16 %v1306, %v1305
        %v1319 = vpack.c.b16 %v1308, %v1307
        %v1320 = vpack.c.b16 %v1310, %v1309
        %v1321 = vpack.c.b16 %v1312, %v1311
        %v1322 = vpack.c.b16 %v1314, %v1313
        %1331 = vmatprep.subr.bf16.mxu0 0
        %1332 = vmatpush1.bf16.msra.mxu0 %v1322
        %1333 = vmatprep.subr.bf16.mxu0 0
        %1334 = vmatpush1.bf16.msra.mxu0 %v1321
        %1335 = vmatprep.subr.bf16.mxu0 0
        %1336 = vmatpush1.bf16.msra.mxu0 %v1320
        %1337 = vmatprep.subr.bf16.mxu0 0
        %1338 = vmatpush1.bf16.msra.mxu0 %v1319
        %1339 = vmatprep.subr.bf16.mxu0 0
        %1340 = vmatpush1.bf16.msra.mxu0 %v1318
        %1341 = vmatprep.subr.bf16.mxu0 0
        %1342 = vmatpush1.bf16.msra.mxu0 %v1317
        %1343 = vmatprep.subr.bf16.mxu0 0
        %1344 = vmatpush1.bf16.msra.mxu0 %v1316
        %1345 = vmatprep.subr.bf16.mxu0 0
        %1346 = vmatpush1.bf16.msra.mxu0 %v1315
        %1347 = vmatprep.subr.bf16.mxu0 0
        %1348 = vmatpush2.bf16.msra.mxu0 0
        %1349 = vmatprep.subr.bf16.mxu0 0
        %1350 = vmatpush2.bf16.msra.mxu0 0
        %1351 = vmatprep.subr.bf16.mxu0 0
        %1352 = vmatpush2.bf16.msra.mxu0 0
        %1353 = vmatprep.subr.bf16.mxu0 0
        %1354 = vmatpush2.bf16.msra.mxu0 0
        %1355 = vmatprep.subr.bf16.mxu0 0
        %1356 = vmatpush2.bf16.msra.mxu0 0
        %1357 = vmatprep.subr.bf16.mxu0 0
        %1358 = vmatpush2.bf16.msra.mxu0 0
        %1359 = vmatprep.subr.bf16.mxu0 0
        %1360 = vmatpush2.bf16.msra.mxu0 0
        %1361 = vmatprep.subr.bf16.mxu0 0
        %1362 = vmatpush2.bf16.msra.mxu0 0
        %1363 = vmatprep.mubr.bf16.mxu0 0
        %1364 = vmatmul.mubr.bf16.gmra.mxu0 %v1265
        %v1365 = vpop.f32.mrf.mxu0
        %v1366 = vadd.f32 0.0, %v1365
        %v1367 = vpop.f32.mrf.mxu0
        %v1368 = vpop.f32.mrf.mxu0
        %v1369 = vadd.f32 0.0, %v1368
        %v1370 = vpop.f32.mrf.mxu0
        %1371 = vdwg.mxu0
        %v1372 = vadd.f32 %v1093, %v1366
        %v1373 = vadd.f32 %v1096, %v1369
        %s1374 = scalar_lea.vmem [#allocation2], 256
        %v1375 = vld [vmem:[%s1374] sm:$0xff]
        %v1376 = vld [vmem:[%s1374 + $0x8] sm:$0xff]
        %v1377 = vld [vmem:[%s1374 + $0x10] sm:$0xff]
        %v1378 = vld [vmem:[%s1374 + $0x18] sm:$0xff]
        %v1379 = vld [vmem:[%s1374 + $0x20] sm:$0xff]
        %v1380 = vld [vmem:[%s1374 + $0x28] sm:$0xff]
        %v1381 = vld [vmem:[%s1374 + $0x30] sm:$0xff]
        %v1382 = vld [vmem:[%s1374 + $0x38] sm:$0xff]
        %v1383 = vld [vmem:[%s1374 + $0x40] sm:$0xff]
        %v1384 = vld [vmem:[%s1374 + $0x48] sm:$0xff]
        %v1385 = vld [vmem:[%s1374 + $0x50] sm:$0xff]
        %v1386 = vld [vmem:[%s1374 + $0x58] sm:$0xff]
        %v1387 = vld [vmem:[%s1374 + $0x60] sm:$0xff]
        %v1388 = vld [vmem:[%s1374 + $0x68] sm:$0xff]
        %v1389 = vld [vmem:[%s1374 + $0x70] sm:$0xff]
        %v1390 = vld [vmem:[%s1374 + $0x78] sm:$0xff]
        %v1407 = vunpack.c.l.b16 %v1375
        %v1408 = vunpack.c.h.b16 %v1375
        %v1409 = vunpack.c.l.b16 %v1376
        %v1410 = vunpack.c.h.b16 %v1376
        %v1411 = vunpack.c.l.b16 %v1377
        %v1412 = vunpack.c.h.b16 %v1377
        %v1413 = vunpack.c.l.b16 %v1378
        %v1414 = vunpack.c.h.b16 %v1378
        %v1415 = vunpack.c.l.b16 %v1379
        %v1416 = vunpack.c.h.b16 %v1379
        %v1417 = vunpack.c.l.b16 %v1380
        %v1418 = vunpack.c.h.b16 %v1380
        %v1419 = vunpack.c.l.b16 %v1381
        %v1420 = vunpack.c.h.b16 %v1381
        %v1421 = vunpack.c.l.b16 %v1382
        %v1422 = vunpack.c.h.b16 %v1382
        %v1423 = vunpack.c.l.b16 %v1383
        %v1424 = vunpack.c.h.b16 %v1383
        %v1425 = vunpack.c.l.b16 %v1384
        %v1426 = vunpack.c.h.b16 %v1384
        %v1427 = vunpack.c.l.b16 %v1385
        %v1428 = vunpack.c.h.b16 %v1385
        %v1429 = vunpack.c.l.b16 %v1386
        %v1430 = vunpack.c.h.b16 %v1386
        %v1431 = vunpack.c.l.b16 %v1387
        %v1432 = vunpack.c.h.b16 %v1387
        %v1433 = vunpack.c.l.b16 %v1388
        %v1434 = vunpack.c.h.b16 %v1388
        %v1435 = vunpack.c.l.b16 %v1389
        %v1436 = vunpack.c.h.b16 %v1389
        %v1437 = vunpack.c.l.b16 %v1390
        %v1438 = vunpack.c.h.b16 %v1390
        %v1439 = vpack.c.b16 %v1409, %v1407
        %v1440 = vpack.c.b16 %v1410, %v1408
        %v1441 = vpack.c.b16 %v1413, %v1411
        %v1442 = vpack.c.b16 %v1414, %v1412
        %v1443 = vpack.c.b16 %v1417, %v1415
        %v1444 = vpack.c.b16 %v1418, %v1416
        %v1445 = vpack.c.b16 %v1421, %v1419
        %v1446 = vpack.c.b16 %v1422, %v1420
        %v1447 = vpack.c.b16 %v1425, %v1423
        %v1448 = vpack.c.b16 %v1426, %v1424
        %v1449 = vpack.c.b16 %v1429, %v1427
        %v1450 = vpack.c.b16 %v1430, %v1428
        %v1451 = vpack.c.b16 %v1433, %v1431
        %v1452 = vpack.c.b16 %v1434, %v1432
        %v1453 = vpack.c.b16 %v1437, %v1435
        %v1454 = vpack.c.b16 %v1438, %v1436
        %1471 = vmatprep.subr.bf16.mxu0 %v1454
        %1472 = vmatpush1.bf16.msra.mxu0 %v1453
        %1473 = vmatprep.subr.bf16.mxu0 %v1452
        %1474 = vmatpush1.bf16.msra.mxu0 %v1451
        %1475 = vmatprep.subr.bf16.mxu0 %v1450
        %1476 = vmatpush1.bf16.msra.mxu0 %v1449
        %1477 = vmatprep.subr.bf16.mxu0 %v1448
        %1478 = vmatpush1.bf16.msra.mxu0 %v1447
        %1479 = vmatprep.subr.bf16.mxu0 %v1446
        %1480 = vmatpush1.bf16.msra.mxu0 %v1445
        %1481 = vmatprep.subr.bf16.mxu0 %v1444
        %1482 = vmatpush1.bf16.msra.mxu0 %v1443
        %1483 = vmatprep.subr.bf16.mxu0 %v1442
        %1484 = vmatpush1.bf16.msra.mxu0 %v1441
        %1485 = vmatprep.subr.bf16.mxu0 %v1440
        %1486 = vmatpush1.bf16.msra.mxu0 %v1439
        %1487 = vmatprep.subr.bf16.mxu0 0
        %1488 = vmatpush2.bf16.msra.mxu0 0
        %1489 = vmatprep.subr.bf16.mxu0 0
        %1490 = vmatpush2.bf16.msra.mxu0 0
        %1491 = vmatprep.subr.bf16.mxu0 0
        %1492 = vmatpush2.bf16.msra.mxu0 0
        %1493 = vmatprep.subr.bf16.mxu0 0
        %1494 = vmatpush2.bf16.msra.mxu0 0
        %1495 = vmatprep.subr.bf16.mxu0 0
        %1496 = vmatpush2.bf16.msra.mxu0 0
        %1497 = vmatprep.subr.bf16.mxu0 0
        %1498 = vmatpush2.bf16.msra.mxu0 0
        %1499 = vmatprep.subr.bf16.mxu0 0
        %1500 = vmatpush2.bf16.msra.mxu0 0
        %1501 = vmatprep.subr.bf16.mxu0 0
        %1502 = vmatpush2.bf16.msra.mxu0 0
        %1503 = vmatprep.mubr.bf16.mxu0 0
        %1504 = vmatmul.mubr.bf16.gmra.mxu0 %v375
        %v1505 = vpop.f32.mrf.mxu0
        %v1506 = vadd.f32 0.0, %v1505
        %v1507 = vpop.f32.mrf.mxu0
        %v1508 = vadd.f32 0.0, %v1507
        %v1509 = vpop.f32.mrf.mxu0
        %v1510 = vadd.f32 0.0, %v1509
        %v1511 = vpop.f32.mrf.mxu0
        %v1512 = vadd.f32 0.0, %v1511
        %1513 = vdwg.mxu0
        %v1514 = vxor.u32 %v1506, 2147483648
        %v1515 = vxor.u32 %v1510, 2147483648
        %v1516 = vmul.f32 %v1514, 1.442695
        %v1517 = vpow.pop %v1516
        %v1518 = vmul.f32 %v1515, 1.442695
        %v1519 = vpow.pop %v1518
        %v1520 = vadd.f32 %v1517, 1.0
        %v1521 = vadd.f32 %v1519, 1.0
        %v1522 = vrcp.pop %v1520
        %v1523 = vmul.f32 1.0, %v1522
        %v1524 = vrcp.pop %v1521
        %v1525 = vmul.f32 1.0, %v1524
        %v1526 = vmul.f32 %v1506, %v1523
        %v1527 = vmul.f32 %v1510, %v1525
        %v1528 = vmul.f32 %v1526, %v1508
        %v1529 = vmul.f32 %v1527, %v1512
        %1530 = vset.pattern.permute.xlu0 2
        %1531 = vperm.xlu0 %1530, %v337
        %v1532 = vpop.permute.xlu0 %1531
        %1534 = vset.pattern.permute.xlu0 2
        %1535 = vperm.xlu0 %1534, %v338
        %v1536 = vpop.permute.xlu0 %1535
        %v1538 = vmul.f32 %v1528, %v1532
        %v1539 = vmul.f32 %v1529, %v1536
        %v1540 = vpack.c.bf16 %v1539, %v1538
        %s1541 = scalar_lea.vmem [#allocation5], 128
        %v1542 = vld [vmem:[%s1541] sm:$0xf]
        %v1543 = vld [vmem:[%s1541 + $0x4] sm:$0xf]
        %v1544 = vld [vmem:[%s1541 + $0x8] sm:$0xf]
        %v1545 = vld [vmem:[%s1541 + $0xc] sm:$0xf]
        %v1546 = vld [vmem:[%s1541 + $0x10] sm:$0xf]
        %v1547 = vld [vmem:[%s1541 + $0x14] sm:$0xf]
        %v1548 = vld [vmem:[%s1541 + $0x18] sm:$0xf]
        %v1549 = vld [vmem:[%s1541 + $0x1c] sm:$0xf]
        %v1550 = vld [vmem:[%s1541 + $0x20] sm:$0xf]
        %v1551 = vld [vmem:[%s1541 + $0x24] sm:$0xf]
        %v1552 = vld [vmem:[%s1541 + $0x28] sm:$0xf]
        %v1553 = vld [vmem:[%s1541 + $0x2c] sm:$0xf]
        %v1554 = vld [vmem:[%s1541 + $0x30] sm:$0xf]
        %v1555 = vld [vmem:[%s1541 + $0x34] sm:$0xf]
        %v1556 = vld [vmem:[%s1541 + $0x38] sm:$0xf]
        %v1557 = vld [vmem:[%s1541 + $0x3c] sm:$0xf]
        %v1574 = vunpack.c.l.b16 %v1542
        %v1575 = vunpack.c.l.b16 %v1543
        %v1576 = vunpack.c.l.b16 %v1544
        %v1577 = vunpack.c.l.b16 %v1545
        %v1578 = vunpack.c.l.b16 %v1546
        %v1579 = vunpack.c.l.b16 %v1547
        %v1580 = vunpack.c.l.b16 %v1548
        %v1581 = vunpack.c.l.b16 %v1549
        %v1582 = vunpack.c.l.b16 %v1550
        %v1583 = vunpack.c.l.b16 %v1551
        %v1584 = vunpack.c.l.b16 %v1552
        %v1585 = vunpack.c.l.b16 %v1553
        %v1586 = vunpack.c.l.b16 %v1554
        %v1587 = vunpack.c.l.b16 %v1555
        %v1588 = vunpack.c.l.b16 %v1556
        %v1589 = vunpack.c.l.b16 %v1557
        %v1590 = vpack.c.b16 %v1575, %v1574
        %v1591 = vpack.c.b16 %v1577, %v1576
        %v1592 = vpack.c.b16 %v1579, %v1578
        %v1593 = vpack.c.b16 %v1581, %v1580
        %v1594 = vpack.c.b16 %v1583, %v1582
        %v1595 = vpack.c.b16 %v1585, %v1584
        %v1596 = vpack.c.b16 %v1587, %v1586
        %v1597 = vpack.c.b16 %v1589, %v1588
        %1606 = vmatprep.subr.bf16.mxu0 0
        %1607 = vmatpush1.bf16.msra.mxu0 %v1597
        %1608 = vmatprep.subr.bf16.mxu0 0
        %1609 = vmatpush1.bf16.msra.mxu0 %v1596
        %1610 = vmatprep.subr.bf16.mxu0 0
        %1611 = vmatpush1.bf16.msra.mxu0 %v1595
        %1612 = vmatprep.subr.bf16.mxu0 0
        %1613 = vmatpush1.bf16.msra.mxu0 %v1594
        %1614 = vmatprep.subr.bf16.mxu0 0
        %1615 = vmatpush1.bf16.msra.mxu0 %v1593
        %1616 = vmatprep.subr.bf16.mxu0 0
        %1617 = vmatpush1.bf16.msra.mxu0 %v1592
        %1618 = vmatprep.subr.bf16.mxu0 0
        %1619 = vmatpush1.bf16.msra.mxu0 %v1591
        %1620 = vmatprep.subr.bf16.mxu0 0
        %1621 = vmatpush1.bf16.msra.mxu0 %v1590
        %1622 = vmatprep.subr.bf16.mxu0 0
        %1623 = vmatpush2.bf16.msra.mxu0 0
        %1624 = vmatprep.subr.bf16.mxu0 0
        %1625 = vmatpush2.bf16.msra.mxu0 0
        %1626 = vmatprep.subr.bf16.mxu0 0
        %1627 = vmatpush2.bf16.msra.mxu0 0
        %1628 = vmatprep.subr.bf16.mxu0 0
        %1629 = vmatpush2.bf16.msra.mxu0 0
        %1630 = vmatprep.subr.bf16.mxu0 0
        %1631 = vmatpush2.bf16.msra.mxu0 0
        %1632 = vmatprep.subr.bf16.mxu0 0
        %1633 = vmatpush2.bf16.msra.mxu0 0
        %1634 = vmatprep.subr.bf16.mxu0 0
        %1635 = vmatpush2.bf16.msra.mxu0 0
        %1636 = vmatprep.subr.bf16.mxu0 0
        %1637 = vmatpush2.bf16.msra.mxu0 0
        %1638 = vmatprep.mubr.bf16.mxu0 0
        %1639 = vmatmul.mubr.bf16.gmra.mxu0 %v1540
        %v1640 = vpop.f32.mrf.mxu0
        %v1641 = vadd.f32 0.0, %v1640
        %v1642 = vpop.f32.mrf.mxu0
        %v1643 = vpop.f32.mrf.mxu0
        %v1644 = vadd.f32 0.0, %v1643
        %v1645 = vpop.f32.mrf.mxu0
        %1646 = vdwg.mxu0
        %v1647 = vadd.f32 %v1372, %v1641
        %v1648 = vadd.f32 %v1373, %v1644
        %s1649 = scalar_lea.vmem [#allocation2], 384
        %v1650 = vld [vmem:[%s1649] sm:$0xff]
        %v1651 = vld [vmem:[%s1649 + $0x8] sm:$0xff]
        %v1652 = vld [vmem:[%s1649 + $0x10] sm:$0xff]
        %v1653 = vld [vmem:[%s1649 + $0x18] sm:$0xff]
        %v1654 = vld [vmem:[%s1649 + $0x20] sm:$0xff]
        %v1655 = vld [vmem:[%s1649 + $0x28] sm:$0xff]
        %v1656 = vld [vmem:[%s1649 + $0x30] sm:$0xff]
        %v1657 = vld [vmem:[%s1649 + $0x38] sm:$0xff]
        %v1658 = vld [vmem:[%s1649 + $0x40] sm:$0xff]
        %v1659 = vld [vmem:[%s1649 + $0x48] sm:$0xff]
        %v1660 = vld [vmem:[%s1649 + $0x50] sm:$0xff]
        %v1661 = vld [vmem:[%s1649 + $0x58] sm:$0xff]
        %v1662 = vld [vmem:[%s1649 + $0x60] sm:$0xff]
        %v1663 = vld [vmem:[%s1649 + $0x68] sm:$0xff]
        %v1664 = vld [vmem:[%s1649 + $0x70] sm:$0xff]
        %v1665 = vld [vmem:[%s1649 + $0x78] sm:$0xff]
        %v1682 = vunpack.c.l.b16 %v1650
        %v1683 = vunpack.c.h.b16 %v1650
        %v1684 = vunpack.c.l.b16 %v1651
        %v1685 = vunpack.c.h.b16 %v1651
        %v1686 = vunpack.c.l.b16 %v1652
        %v1687 = vunpack.c.h.b16 %v1652
        %v1688 = vunpack.c.l.b16 %v1653
        %v1689 = vunpack.c.h.b16 %v1653
        %v1690 = vunpack.c.l.b16 %v1654
        %v1691 = vunpack.c.h.b16 %v1654
        %v1692 = vunpack.c.l.b16 %v1655
        %v1693 = vunpack.c.h.b16 %v1655
        %v1694 = vunpack.c.l.b16 %v1656
        %v1695 = vunpack.c.h.b16 %v1656
        %v1696 = vunpack.c.l.b16 %v1657
        %v1697 = vunpack.c.h.b16 %v1657
        %v1698 = vunpack.c.l.b16 %v1658
        %v1699 = vunpack.c.h.b16 %v1658
        %v1700 = vunpack.c.l.b16 %v1659
        %v1701 = vunpack.c.h.b16 %v1659
        %v1702 = vunpack.c.l.b16 %v1660
        %v1703 = vunpack.c.h.b16 %v1660
        %v1704 = vunpack.c.l.b16 %v1661
        %v1705 = vunpack.c.h.b16 %v1661
        %v1706 = vunpack.c.l.b16 %v1662
        %v1707 = vunpack.c.h.b16 %v1662
        %v1708 = vunpack.c.l.b16 %v1663
        %v1709 = vunpack.c.h.b16 %v1663
        %v1710 = vunpack.c.l.b16 %v1664
        %v1711 = vunpack.c.h.b16 %v1664
        %v1712 = vunpack.c.l.b16 %v1665
        %v1713 = vunpack.c.h.b16 %v1665
        %v1714 = vpack.c.b16 %v1684, %v1682
        %v1715 = vpack.c.b16 %v1685, %v1683
        %v1716 = vpack.c.b16 %v1688, %v1686
        %v1717 = vpack.c.b16 %v1689, %v1687
        %v1718 = vpack.c.b16 %v1692, %v1690
        %v1719 = vpack.c.b16 %v1693, %v1691
        %v1720 = vpack.c.b16 %v1696, %v1694
        %v1721 = vpack.c.b16 %v1697, %v1695
        %v1722 = vpack.c.b16 %v1700, %v1698
        %v1723 = vpack.c.b16 %v1701, %v1699
        %v1724 = vpack.c.b16 %v1704, %v1702
        %v1725 = vpack.c.b16 %v1705, %v1703
        %v1726 = vpack.c.b16 %v1708, %v1706
        %v1727 = vpack.c.b16 %v1709, %v1707
        %v1728 = vpack.c.b16 %v1712, %v1710
        %v1729 = vpack.c.b16 %v1713, %v1711
        %1746 = vmatprep.subr.bf16.mxu0 %v1729
        %1747 = vmatpush1.bf16.msra.mxu0 %v1728
        %1748 = vmatprep.subr.bf16.mxu0 %v1727
        %1749 = vmatpush1.bf16.msra.mxu0 %v1726
        %1750 = vmatprep.subr.bf16.mxu0 %v1725
        %1751 = vmatpush1.bf16.msra.mxu0 %v1724
        %1752 = vmatprep.subr.bf16.mxu0 %v1723
        %1753 = vmatpush1.bf16.msra.mxu0 %v1722
        %1754 = vmatprep.subr.bf16.mxu0 %v1721
        %1755 = vmatpush1.bf16.msra.mxu0 %v1720
        %1756 = vmatprep.subr.bf16.mxu0 %v1719
        %1757 = vmatpush1.bf16.msra.mxu0 %v1718
        %1758 = vmatprep.subr.bf16.mxu0 %v1717
        %1759 = vmatpush1.bf16.msra.mxu0 %v1716
        %1760 = vmatprep.subr.bf16.mxu0 %v1715
        %1761 = vmatpush1.bf16.msra.mxu0 %v1714
        %1762 = vmatprep.subr.bf16.mxu0 0
        %1763 = vmatpush2.bf16.msra.mxu0 0
        %1764 = vmatprep.subr.bf16.mxu0 0
        %1765 = vmatpush2.bf16.msra.mxu0 0
        %1766 = vmatprep.subr.bf16.mxu0 0
        %1767 = vmatpush2.bf16.msra.mxu0 0
        %1768 = vmatprep.subr.bf16.mxu0 0
        %1769 = vmatpush2.bf16.msra.mxu0 0
        %1770 = vmatprep.subr.bf16.mxu0 0
        %1771 = vmatpush2.bf16.msra.mxu0 0
        %1772 = vmatprep.subr.bf16.mxu0 0
        %1773 = vmatpush2.bf16.msra.mxu0 0
        %1774 = vmatprep.subr.bf16.mxu0 0
        %1775 = vmatpush2.bf16.msra.mxu0 0
        %1776 = vmatprep.subr.bf16.mxu0 0
        %1777 = vmatpush2.bf16.msra.mxu0 0
        %1778 = vmatprep.mubr.bf16.mxu0 0
        %1779 = vmatmul.mubr.bf16.gmra.mxu0 %v375
        %v1780 = vpop.f32.mrf.mxu0
        %v1781 = vadd.f32 0.0, %v1780
        %v1782 = vpop.f32.mrf.mxu0
        %v1783 = vadd.f32 0.0, %v1782
        %v1784 = vpop.f32.mrf.mxu0
        %v1785 = vadd.f32 0.0, %v1784
        %v1786 = vpop.f32.mrf.mxu0
        %v1787 = vadd.f32 0.0, %v1786
        %1788 = vdwg.mxu0
        %v1789 = vxor.u32 %v1781, 2147483648
        %v1790 = vxor.u32 %v1785, 2147483648
        %v1791 = vmul.f32 %v1789, 1.442695
        %v1792 = vpow.pop %v1791
        %v1793 = vmul.f32 %v1790, 1.442695
        %v1794 = vpow.pop %v1793
        %v1795 = vadd.f32 %v1792, 1.0
        %v1796 = vadd.f32 %v1794, 1.0
        %v1797 = vrcp.pop %v1795
        %v1798 = vmul.f32 1.0, %v1797
        %v1799 = vrcp.pop %v1796
        %v1800 = vmul.f32 1.0, %v1799
        %v1801 = vmul.f32 %v1781, %v1798
        %v1802 = vmul.f32 %v1785, %v1800
        %v1803 = vmul.f32 %v1801, %v1783
        %v1804 = vmul.f32 %v1802, %v1787
        %1805 = vset.pattern.permute.xlu0 3
        %1806 = vperm.xlu0 %1805, %v337
        %v1807 = vpop.permute.xlu0 %1806
        %1809 = vset.pattern.permute.xlu0 3
        %1810 = vperm.xlu0 %1809, %v338
        %v1811 = vpop.permute.xlu0 %1810
        %v1813 = vmul.f32 %v1803, %v1807
        %v1814 = vmul.f32 %v1804, %v1811
        %v1815 = vpack.c.bf16 %v1814, %v1813
        %s1816 = scalar_lea.vmem [#allocation5], 192
        %v1817 = vld [vmem:[%s1816] sm:$0xf]
        %v1818 = vld [vmem:[%s1816 + $0x4] sm:$0xf]
        %v1819 = vld [vmem:[%s1816 + $0x8] sm:$0xf]
        %v1820 = vld [vmem:[%s1816 + $0xc] sm:$0xf]
        %v1821 = vld [vmem:[%s1816 + $0x10] sm:$0xf]
        %v1822 = vld [vmem:[%s1816 + $0x14] sm:$0xf]
        %v1823 = vld [vmem:[%s1816 + $0x18] sm:$0xf]
        %v1824 = vld [vmem:[%s1816 + $0x1c] sm:$0xf]
        %v1825 = vld [vmem:[%s1816 + $0x20] sm:$0xf]
        %v1826 = vld [vmem:[%s1816 + $0x24] sm:$0xf]
        %v1827 = vld [vmem:[%s1816 + $0x28] sm:$0xf]
        %v1828 = vld [vmem:[%s1816 + $0x2c] sm:$0xf]
        %v1829 = vld [vmem:[%s1816 + $0x30] sm:$0xf]
        %v1830 = vld [vmem:[%s1816 + $0x34] sm:$0xf]
        %v1831 = vld [vmem:[%s1816 + $0x38] sm:$0xf]
        %v1832 = vld [vmem:[%s1816 + $0x3c] sm:$0xf]
        %v1849 = vunpack.c.l.b16 %v1817
        %v1850 = vunpack.c.l.b16 %v1818
        %v1851 = vunpack.c.l.b16 %v1819
        %v1852 = vunpack.c.l.b16 %v1820
        %v1853 = vunpack.c.l.b16 %v1821
        %v1854 = vunpack.c.l.b16 %v1822
        %v1855 = vunpack.c.l.b16 %v1823
        %v1856 = vunpack.c.l.b16 %v1824
        %v1857 = vunpack.c.l.b16 %v1825
        %v1858 = vunpack.c.l.b16 %v1826
        %v1859 = vunpack.c.l.b16 %v1827
        %v1860 = vunpack.c.l.b16 %v1828
        %v1861 = vunpack.c.l.b16 %v1829
        %v1862 = vunpack.c.l.b16 %v1830
        %v1863 = vunpack.c.l.b16 %v1831
        %v1864 = vunpack.c.l.b16 %v1832
        %v1865 = vpack.c.b16 %v1850, %v1849
        %v1866 = vpack.c.b16 %v1852, %v1851
        %v1867 = vpack.c.b16 %v1854, %v1853
        %v1868 = vpack.c.b16 %v1856, %v1855
        %v1869 = vpack.c.b16 %v1858, %v1857
        %v1870 = vpack.c.b16 %v1860, %v1859
        %v1871 = vpack.c.b16 %v1862, %v1861
        %v1872 = vpack.c.b16 %v1864, %v1863
        %1881 = vmatprep.subr.bf16.mxu0 0
        %1882 = vmatpush1.bf16.msra.mxu0 %v1872
        %1883 = vmatprep.subr.bf16.mxu0 0
        %1884 = vmatpush1.bf16.msra.mxu0 %v1871
        %1885 = vmatprep.subr.bf16.mxu0 0
        %1886 = vmatpush1.bf16.msra.mxu0 %v1870
        %1887 = vmatprep.subr.bf16.mxu0 0
        %1888 = vmatpush1.bf16.msra.mxu0 %v1869
        %1889 = vmatprep.subr.bf16.mxu0 0
        %1890 = vmatpush1.bf16.msra.mxu0 %v1868
        %1891 = vmatprep.subr.bf16.mxu0 0
        %1892 = vmatpush1.bf16.msra.mxu0 %v1867
        %1893 = vmatprep.subr.bf16.mxu0 0
        %1894 = vmatpush1.bf16.msra.mxu0 %v1866
        %1895 = vmatprep.subr.bf16.mxu0 0
        %1896 = vmatpush1.bf16.msra.mxu0 %v1865
        %1897 = vmatprep.subr.bf16.mxu0 0
        %1898 = vmatpush2.bf16.msra.mxu0 0
        %1899 = vmatprep.subr.bf16.mxu0 0
        %1900 = vmatpush2.bf16.msra.mxu0 0
        %1901 = vmatprep.subr.bf16.mxu0 0
        %1902 = vmatpush2.bf16.msra.mxu0 0
        %1903 = vmatprep.subr.bf16.mxu0 0
        %1904 = vmatpush2.bf16.msra.mxu0 0
        %1905 = vmatprep.subr.bf16.mxu0 0
        %1906 = vmatpush2.bf16.msra.mxu0 0
        %1907 = vmatprep.subr.bf16.mxu0 0
        %1908 = vmatpush2.bf16.msra.mxu0 0
        %1909 = vmatprep.subr.bf16.mxu0 0
        %1910 = vmatpush2.bf16.msra.mxu0 0
        %1911 = vmatprep.subr.bf16.mxu0 0
        %1912 = vmatpush2.bf16.msra.mxu0 0
        %1913 = vmatprep.mubr.bf16.mxu0 0
        %1914 = vmatmul.mubr.bf16.gmra.mxu0 %v1815
        %v1915 = vpop.f32.mrf.mxu0
        %v1916 = vadd.f32 0.0, %v1915
        %v1917 = vpop.f32.mrf.mxu0
        %v1918 = vpop.f32.mrf.mxu0
        %v1919 = vadd.f32 0.0, %v1918
        %v1920 = vpop.f32.mrf.mxu0
        %1921 = vdwg.mxu0
        %v1922 = vadd.f32 %v1647, %v1916
        %v1923 = vadd.f32 %v1648, %v1919
        %s1924 = scalar_lea.vmem [#allocation2], 512
        %v1925 = vld [vmem:[%s1924] sm:$0xff]
        %v1926 = vld [vmem:[%s1924 + $0x8] sm:$0xff]
        %v1927 = vld [vmem:[%s1924 + $0x10] sm:$0xff]
        %v1928 = vld [vmem:[%s1924 + $0x18] sm:$0xff]
        %v1929 = vld [vmem:[%s1924 + $0x20] sm:$0xff]
        %v1930 = vld [vmem:[%s1924 + $0x28] sm:$0xff]
        %v1931 = vld [vmem:[%s1924 + $0x30] sm:$0xff]
        %v1932 = vld [vmem:[%s1924 + $0x38] sm:$0xff]
        %v1933 = vld [vmem:[%s1924 + $0x40] sm:$0xff]
        %v1934 = vld [vmem:[%s1924 + $0x48] sm:$0xff]
        %v1935 = vld [vmem:[%s1924 + $0x50] sm:$0xff]
        %v1936 = vld [vmem:[%s1924 + $0x58] sm:$0xff]
        %v1937 = vld [vmem:[%s1924 + $0x60] sm:$0xff]
        %v1938 = vld [vmem:[%s1924 + $0x68] sm:$0xff]
        %v1939 = vld [vmem:[%s1924 + $0x70] sm:$0xff]
        %v1940 = vld [vmem:[%s1924 + $0x78] sm:$0xff]
        %v1957 = vunpack.c.l.b16 %v1925
        %v1958 = vunpack.c.h.b16 %v1925
        %v1959 = vunpack.c.l.b16 %v1926
        %v1960 = vunpack.c.h.b16 %v1926
        %v1961 = vunpack.c.l.b16 %v1927
        %v1962 = vunpack.c.h.b16 %v1927
        %v1963 = vunpack.c.l.b16 %v1928
        %v1964 = vunpack.c.h.b16 %v1928
        %v1965 = vunpack.c.l.b16 %v1929
        %v1966 = vunpack.c.h.b16 %v1929
        %v1967 = vunpack.c.l.b16 %v1930
        %v1968 = vunpack.c.h.b16 %v1930
        %v1969 = vunpack.c.l.b16 %v1931
        %v1970 = vunpack.c.h.b16 %v1931
        %v1971 = vunpack.c.l.b16 %v1932
        %v1972 = vunpack.c.h.b16 %v1932
        %v1973 = vunpack.c.l.b16 %v1933
        %v1974 = vunpack.c.h.b16 %v1933
        %v1975 = vunpack.c.l.b16 %v1934
        %v1976 = vunpack.c.h.b16 %v1934
        %v1977 = vunpack.c.l.b16 %v1935
        %v1978 = vunpack.c.h.b16 %v1935
        %v1979 = vunpack.c.l.b16 %v1936
        %v1980 = vunpack.c.h.b16 %v1936
        %v1981 = vunpack.c.l.b16 %v1937
        %v1982 = vunpack.c.h.b16 %v1937
        %v1983 = vunpack.c.l.b16 %v1938
        %v1984 = vunpack.c.h.b16 %v1938
        %v1985 = vunpack.c.l.b16 %v1939
        %v1986 = vunpack.c.h.b16 %v1939
        %v1987 = vunpack.c.l.b16 %v1940
        %v1988 = vunpack.c.h.b16 %v1940
        %v1989 = vpack.c.b16 %v1959, %v1957
        %v1990 = vpack.c.b16 %v1960, %v1958
        %v1991 = vpack.c.b16 %v1963, %v1961
        %v1992 = vpack.c.b16 %v1964, %v1962
        %v1993 = vpack.c.b16 %v1967, %v1965
        %v1994 = vpack.c.b16 %v1968, %v1966
        %v1995 = vpack.c.b16 %v1971, %v1969
        %v1996 = vpack.c.b16 %v1972, %v1970
        %v1997 = vpack.c.b16 %v1975, %v1973
        %v1998 = vpack.c.b16 %v1976, %v1974
        %v1999 = vpack.c.b16 %v1979, %v1977
        %v2000 = vpack.c.b16 %v1980, %v1978
        %v2001 = vpack.c.b16 %v1983, %v1981
        %v2002 = vpack.c.b16 %v1984, %v1982
        %v2003 = vpack.c.b16 %v1987, %v1985
        %v2004 = vpack.c.b16 %v1988, %v1986
        %2021 = vmatprep.subr.bf16.mxu0 %v2004
        %2022 = vmatpush1.bf16.msra.mxu0 %v2003
        %2023 = vmatprep.subr.bf16.mxu0 %v2002
        %2024 = vmatpush1.bf16.msra.mxu0 %v2001
        %2025 = vmatprep.subr.bf16.mxu0 %v2000
        %2026 = vmatpush1.bf16.msra.mxu0 %v1999
        %2027 = vmatprep.subr.bf16.mxu0 %v1998
        %2028 = vmatpush1.bf16.msra.mxu0 %v1997
        %2029 = vmatprep.subr.bf16.mxu0 %v1996
        %2030 = vmatpush1.bf16.msra.mxu0 %v1995
        %2031 = vmatprep.subr.bf16.mxu0 %v1994
        %2032 = vmatpush1.bf16.msra.mxu0 %v1993
        %2033 = vmatprep.subr.bf16.mxu0 %v1992
        %2034 = vmatpush1.bf16.msra.mxu0 %v1991
        %2035 = vmatprep.subr.bf16.mxu0 %v1990
        %2036 = vmatpush1.bf16.msra.mxu0 %v1989
        %2037 = vmatprep.subr.bf16.mxu0 0
        %2038 = vmatpush2.bf16.msra.mxu0 0
        %2039 = vmatprep.subr.bf16.mxu0 0
        %2040 = vmatpush2.bf16.msra.mxu0 0
        %2041 = vmatprep.subr.bf16.mxu0 0
        %2042 = vmatpush2.bf16.msra.mxu0 0
        %2043 = vmatprep.subr.bf16.mxu0 0
        %2044 = vmatpush2.bf16.msra.mxu0 0
        %2045 = vmatprep.subr.bf16.mxu0 0
        %2046 = vmatpush2.bf16.msra.mxu0 0
        %2047 = vmatprep.subr.bf16.mxu0 0
        %2048 = vmatpush2.bf16.msra.mxu0 0
        %2049 = vmatprep.subr.bf16.mxu0 0
        %2050 = vmatpush2.bf16.msra.mxu0 0
        %2051 = vmatprep.subr.bf16.mxu0 0
        %2052 = vmatpush2.bf16.msra.mxu0 0
        %2053 = vmatprep.mubr.bf16.mxu0 0
        %2054 = vmatmul.mubr.bf16.gmra.mxu0 %v375
        %v2055 = vpop.f32.mrf.mxu0
        %v2056 = vadd.f32 0.0, %v2055
        %v2057 = vpop.f32.mrf.mxu0
        %v2058 = vadd.f32 0.0, %v2057
        %v2059 = vpop.f32.mrf.mxu0
        %v2060 = vadd.f32 0.0, %v2059
        %v2061 = vpop.f32.mrf.mxu0
        %v2062 = vadd.f32 0.0, %v2061
        %2063 = vdwg.mxu0
        %v2064 = vxor.u32 %v2056, 2147483648
        %v2065 = vxor.u32 %v2060, 2147483648
        %v2066 = vmul.f32 %v2064, 1.442695
        %v2067 = vpow.pop %v2066
        %v2068 = vmul.f32 %v2065, 1.442695
        %v2069 = vpow.pop %v2068
        %v2070 = vadd.f32 %v2067, 1.0
        %v2071 = vadd.f32 %v2069, 1.0
        %v2072 = vrcp.pop %v2070
        %v2073 = vmul.f32 1.0, %v2072
        %v2074 = vrcp.pop %v2071
        %v2075 = vmul.f32 1.0, %v2074
        %v2076 = vmul.f32 %v2056, %v2073
        %v2077 = vmul.f32 %v2060, %v2075
        %v2078 = vmul.f32 %v2076, %v2058
        %v2079 = vmul.f32 %v2077, %v2062
        %2080 = vset.pattern.permute.xlu0 4
        %2081 = vperm.xlu0 %2080, %v337
        %v2082 = vpop.permute.xlu0 %2081
        %2084 = vset.pattern.permute.xlu0 4
        %2085 = vperm.xlu0 %2084, %v338
        %v2086 = vpop.permute.xlu0 %2085
        %v2088 = vmul.f32 %v2078, %v2082
        %v2089 = vmul.f32 %v2079, %v2086
        %v2090 = vpack.c.bf16 %v2089, %v2088
        %s2091 = scalar_lea.vmem [#allocation5], 256
        %v2092 = vld [vmem:[%s2091] sm:$0xf]
        %v2093 = vld [vmem:[%s2091 + $0x4] sm:$0xf]
        %v2094 = vld [vmem:[%s2091 + $0x8] sm:$0xf]
        %v2095 = vld [vmem:[%s2091 + $0xc] sm:$0xf]
        %v2096 = vld [vmem:[%s2091 + $0x10] sm:$0xf]
        %v2097 = vld [vmem:[%s2091 + $0x14] sm:$0xf]
        %v2098 = vld [vmem:[%s2091 + $0x18] sm:$0xf]
        %v2099 = vld [vmem:[%s2091 + $0x1c] sm:$0xf]
        %v2100 = vld [vmem:[%s2091 + $0x20] sm:$0xf]
        %v2101 = vld [vmem:[%s2091 + $0x24] sm:$0xf]
        %v2102 = vld [vmem:[%s2091 + $0x28] sm:$0xf]
        %v2103 = vld [vmem:[%s2091 + $0x2c] sm:$0xf]
        %v2104 = vld [vmem:[%s2091 + $0x30] sm:$0xf]
        %v2105 = vld [vmem:[%s2091 + $0x34] sm:$0xf]
        %v2106 = vld [vmem:[%s2091 + $0x38] sm:$0xf]
        %v2107 = vld [vmem:[%s2091 + $0x3c] sm:$0xf]
        %v2124 = vunpack.c.l.b16 %v2092
        %v2125 = vunpack.c.l.b16 %v2093
        %v2126 = vunpack.c.l.b16 %v2094
        %v2127 = vunpack.c.l.b16 %v2095
        %v2128 = vunpack.c.l.b16 %v2096
        %v2129 = vunpack.c.l.b16 %v2097
        %v2130 = vunpack.c.l.b16 %v2098
        %v2131 = vunpack.c.l.b16 %v2099
        %v2132 = vunpack.c.l.b16 %v2100
        %v2133 = vunpack.c.l.b16 %v2101
        %v2134 = vunpack.c.l.b16 %v2102
        %v2135 = vunpack.c.l.b16 %v2103
        %v2136 = vunpack.c.l.b16 %v2104
        %v2137 = vunpack.c.l.b16 %v2105
        %v2138 = vunpack.c.l.b16 %v2106
        %v2139 = vunpack.c.l.b16 %v2107
        %v2140 = vpack.c.b16 %v2125, %v2124
        %v2141 = vpack.c.b16 %v2127, %v2126
        %v2142 = vpack.c.b16 %v2129, %v2128
        %v2143 = vpack.c.b16 %v2131, %v2130
        %v2144 = vpack.c.b16 %v2133, %v2132
        %v2145 = vpack.c.b16 %v2135, %v2134
        %v2146 = vpack.c.b16 %v2137, %v2136
        %v2147 = vpack.c.b16 %v2139, %v2138
        %2156 = vmatprep.subr.bf16.mxu0 0
        %2157 = vmatpush1.bf16.msra.mxu0 %v2147
        %2158 = vmatprep.subr.bf16.mxu0 0
        %2159 = vmatpush1.bf16.msra.mxu0 %v2146
        %2160 = vmatprep.subr.bf16.mxu0 0
        %2161 = vmatpush1.bf16.msra.mxu0 %v2145
        %2162 = vmatprep.subr.bf16.mxu0 0
        %2163 = vmatpush1.bf16.msra.mxu0 %v2144
        %2164 = vmatprep.subr.bf16.mxu0 0
        %2165 = vmatpush1.bf16.msra.mxu0 %v2143
        %2166 = vmatprep.subr.bf16.mxu0 0
        %2167 = vmatpush1.bf16.msra.mxu0 %v2142
        %2168 = vmatprep.subr.bf16.mxu0 0
        %2169 = vmatpush1.bf16.msra.mxu0 %v2141
        %2170 = vmatprep.subr.bf16.mxu0 0
        %2171 = vmatpush1.bf16.msra.mxu0 %v2140
        %2172 = vmatprep.subr.bf16.mxu0 0
        %2173 = vmatpush2.bf16.msra.mxu0 0
        %2174 = vmatprep.subr.bf16.mxu0 0
        %2175 = vmatpush2.bf16.msra.mxu0 0
        %2176 = vmatprep.subr.bf16.mxu0 0
        %2177 = vmatpush2.bf16.msra.mxu0 0
        %2178 = vmatprep.subr.bf16.mxu0 0
        %2179 = vmatpush2.bf16.msra.mxu0 0
        %2180 = vmatprep.subr.bf16.mxu0 0
        %2181 = vmatpush2.bf16.msra.mxu0 0
        %2182 = vmatprep.subr.bf16.mxu0 0
        %2183 = vmatpush2.bf16.msra.mxu0 0
        %2184 = vmatprep.subr.bf16.mxu0 0
        %2185 = vmatpush2.bf16.msra.mxu0 0
        %2186 = vmatprep.subr.bf16.mxu0 0
        %2187 = vmatpush2.bf16.msra.mxu0 0
        %2188 = vmatprep.mubr.bf16.mxu0 0
        %2189 = vmatmul.mubr.bf16.gmra.mxu0 %v2090
        %v2190 = vpop.f32.mrf.mxu0
        %v2191 = vadd.f32 0.0, %v2190
        %v2192 = vpop.f32.mrf.mxu0
        %v2193 = vpop.f32.mrf.mxu0
        %v2194 = vadd.f32 0.0, %v2193
        %v2195 = vpop.f32.mrf.mxu0
        %2196 = vdwg.mxu0
        %v2197 = vadd.f32 %v1922, %v2191
        %v2198 = vadd.f32 %v1923, %v2194
        %s2199 = scalar_lea.vmem [#allocation2], 640
        %v2200 = vld [vmem:[%s2199] sm:$0xff]
        %v2201 = vld [vmem:[%s2199 + $0x8] sm:$0xff]
        %v2202 = vld [vmem:[%s2199 + $0x10] sm:$0xff]
        %v2203 = vld [vmem:[%s2199 + $0x18] sm:$0xff]
        %v2204 = vld [vmem:[%s2199 + $0x20] sm:$0xff]
        %v2205 = vld [vmem:[%s2199 + $0x28] sm:$0xff]
        %v2206 = vld [vmem:[%s2199 + $0x30] sm:$0xff]
        %v2207 = vld [vmem:[%s2199 + $0x38] sm:$0xff]
        %v2208 = vld [vmem:[%s2199 + $0x40] sm:$0xff]
        %v2209 = vld [vmem:[%s2199 + $0x48] sm:$0xff]
        %v2210 = vld [vmem:[%s2199 + $0x50] sm:$0xff]
        %v2211 = vld [vmem:[%s2199 + $0x58] sm:$0xff]
        %v2212 = vld [vmem:[%s2199 + $0x60] sm:$0xff]
        %v2213 = vld [vmem:[%s2199 + $0x68] sm:$0xff]
        %v2214 = vld [vmem:[%s2199 + $0x70] sm:$0xff]
        %v2215 = vld [vmem:[%s2199 + $0x78] sm:$0xff]
        %v2232 = vunpack.c.l.b16 %v2200
        %v2233 = vunpack.c.h.b16 %v2200
        %v2234 = vunpack.c.l.b16 %v2201
        %v2235 = vunpack.c.h.b16 %v2201
        %v2236 = vunpack.c.l.b16 %v2202
        %v2237 = vunpack.c.h.b16 %v2202
        %v2238 = vunpack.c.l.b16 %v2203
        %v2239 = vunpack.c.h.b16 %v2203
        %v2240 = vunpack.c.l.b16 %v2204
        %v2241 = vunpack.c.h.b16 %v2204
        %v2242 = vunpack.c.l.b16 %v2205
        %v2243 = vunpack.c.h.b16 %v2205
        %v2244 = vunpack.c.l.b16 %v2206
        %v2245 = vunpack.c.h.b16 %v2206
        %v2246 = vunpack.c.l.b16 %v2207
        %v2247 = vunpack.c.h.b16 %v2207
        %v2248 = vunpack.c.l.b16 %v2208
        %v2249 = vunpack.c.h.b16 %v2208
        %v2250 = vunpack.c.l.b16 %v2209
        %v2251 = vunpack.c.h.b16 %v2209
        %v2252 = vunpack.c.l.b16 %v2210
        %v2253 = vunpack.c.h.b16 %v2210
        %v2254 = vunpack.c.l.b16 %v2211
        %v2255 = vunpack.c.h.b16 %v2211
        %v2256 = vunpack.c.l.b16 %v2212
        %v2257 = vunpack.c.h.b16 %v2212
        %v2258 = vunpack.c.l.b16 %v2213
        %v2259 = vunpack.c.h.b16 %v2213
        %v2260 = vunpack.c.l.b16 %v2214
        %v2261 = vunpack.c.h.b16 %v2214
        %v2262 = vunpack.c.l.b16 %v2215
        %v2263 = vunpack.c.h.b16 %v2215
        %v2264 = vpack.c.b16 %v2234, %v2232
        %v2265 = vpack.c.b16 %v2235, %v2233
        %v2266 = vpack.c.b16 %v2238, %v2236
        %v2267 = vpack.c.b16 %v2239, %v2237
        %v2268 = vpack.c.b16 %v2242, %v2240
        %v2269 = vpack.c.b16 %v2243, %v2241
        %v2270 = vpack.c.b16 %v2246, %v2244
        %v2271 = vpack.c.b16 %v2247, %v2245
        %v2272 = vpack.c.b16 %v2250, %v2248
        %v2273 = vpack.c.b16 %v2251, %v2249
        %v2274 = vpack.c.b16 %v2254, %v2252
        %v2275 = vpack.c.b16 %v2255, %v2253
        %v2276 = vpack.c.b16 %v2258, %v2256
        %v2277 = vpack.c.b16 %v2259, %v2257
        %v2278 = vpack.c.b16 %v2262, %v2260
        %v2279 = vpack.c.b16 %v2263, %v2261
        %2296 = vmatprep.subr.bf16.mxu0 %v2279
        %2297 = vmatpush1.bf16.msra.mxu0 %v2278
        %2298 = vmatprep.subr.bf16.mxu0 %v2277
        %2299 = vmatpush1.bf16.msra.mxu0 %v2276
        %2300 = vmatprep.subr.bf16.mxu0 %v2275
        %2301 = vmatpush1.bf16.msra.mxu0 %v2274
        %2302 = vmatprep.subr.bf16.mxu0 %v2273
        %2303 = vmatpush1.bf16.msra.mxu0 %v2272
        %2304 = vmatprep.subr.bf16.mxu0 %v2271
        %2305 = vmatpush1.bf16.msra.mxu0 %v2270
        %2306 = vmatprep.subr.bf16.mxu0 %v2269
        %2307 = vmatpush1.bf16.msra.mxu0 %v2268
        %2308 = vmatprep.subr.bf16.mxu0 %v2267
        %2309 = vmatpush1.bf16.msra.mxu0 %v2266
        %2310 = vmatprep.subr.bf16.mxu0 %v2265
        %2311 = vmatpush1.bf16.msra.mxu0 %v2264
        %2312 = vmatprep.subr.bf16.mxu0 0
        %2313 = vmatpush2.bf16.msra.mxu0 0
        %2314 = vmatprep.subr.bf16.mxu0 0
        %2315 = vmatpush2.bf16.msra.mxu0 0
        %2316 = vmatprep.subr.bf16.mxu0 0
        %2317 = vmatpush2.bf16.msra.mxu0 0
        %2318 = vmatprep.subr.bf16.mxu0 0
        %2319 = vmatpush2.bf16.msra.mxu0 0
        %2320 = vmatprep.subr.bf16.mxu0 0
        %2321 = vmatpush2.bf16.msra.mxu0 0
        %2322 = vmatprep.subr.bf16.mxu0 0
        %2323 = vmatpush2.bf16.msra.mxu0 0
        %2324 = vmatprep.subr.bf16.mxu0 0
        %2325 = vmatpush2.bf16.msra.mxu0 0
        %2326 = vmatprep.subr.bf16.mxu0 0
        %2327 = vmatpush2.bf16.msra.mxu0 0
        %2328 = vmatprep.mubr.bf16.mxu0 0
        %2329 = vmatmul.mubr.bf16.gmra.mxu0 %v375
        %v2330 = vpop.f32.mrf.mxu0
        %v2331 = vadd.f32 0.0, %v2330
        %v2332 = vpop.f32.mrf.mxu0
        %v2333 = vadd.f32 0.0, %v2332
        %v2334 = vpop.f32.mrf.mxu0
        %v2335 = vadd.f32 0.0, %v2334
        %v2336 = vpop.f32.mrf.mxu0
        %v2337 = vadd.f32 0.0, %v2336
        %2338 = vdwg.mxu0
        %v2339 = vxor.u32 %v2331, 2147483648
        %v2340 = vxor.u32 %v2335, 2147483648
        %v2341 = vmul.f32 %v2339, 1.442695
        %v2342 = vpow.pop %v2341
        %v2343 = vmul.f32 %v2340, 1.442695
        %v2344 = vpow.pop %v2343
        %v2345 = vadd.f32 %v2342, 1.0
        %v2346 = vadd.f32 %v2344, 1.0
        %v2347 = vrcp.pop %v2345
        %v2348 = vmul.f32 1.0, %v2347
        %v2349 = vrcp.pop %v2346
        %v2350 = vmul.f32 1.0, %v2349
        %v2351 = vmul.f32 %v2331, %v2348
        %v2352 = vmul.f32 %v2335, %v2350
        %v2353 = vmul.f32 %v2351, %v2333
        %v2354 = vmul.f32 %v2352, %v2337
        %2355 = vset.pattern.permute.xlu0 5
        %2356 = vperm.xlu0 %2355, %v337
        %v2357 = vpop.permute.xlu0 %2356
        %2359 = vset.pattern.permute.xlu0 5
        %2360 = vperm.xlu0 %2359, %v338
        %v2361 = vpop.permute.xlu0 %2360
        %v2363 = vmul.f32 %v2353, %v2357
        %v2364 = vmul.f32 %v2354, %v2361
        %v2365 = vpack.c.bf16 %v2364, %v2363
        %s2366 = scalar_lea.vmem [#allocation5], 320
        %v2367 = vld [vmem:[%s2366] sm:$0xf]
        %v2368 = vld [vmem:[%s2366 + $0x4] sm:$0xf]
        %v2369 = vld [vmem:[%s2366 + $0x8] sm:$0xf]
        %v2370 = vld [vmem:[%s2366 + $0xc] sm:$0xf]
        %v2371 = vld [vmem:[%s2366 + $0x10] sm:$0xf]
        %v2372 = vld [vmem:[%s2366 + $0x14] sm:$0xf]
        %v2373 = vld [vmem:[%s2366 + $0x18] sm:$0xf]
        %v2374 = vld [vmem:[%s2366 + $0x1c] sm:$0xf]
        %v2375 = vld [vmem:[%s2366 + $0x20] sm:$0xf]
        %v2376 = vld [vmem:[%s2366 + $0x24] sm:$0xf]
        %v2377 = vld [vmem:[%s2366 + $0x28] sm:$0xf]
        %v2378 = vld [vmem:[%s2366 + $0x2c] sm:$0xf]
        %v2379 = vld [vmem:[%s2366 + $0x30] sm:$0xf]
        %v2380 = vld [vmem:[%s2366 + $0x34] sm:$0xf]
        %v2381 = vld [vmem:[%s2366 + $0x38] sm:$0xf]
        %v2382 = vld [vmem:[%s2366 + $0x3c] sm:$0xf]
        %v2399 = vunpack.c.l.b16 %v2367
        %v2400 = vunpack.c.l.b16 %v2368
        %v2401 = vunpack.c.l.b16 %v2369
        %v2402 = vunpack.c.l.b16 %v2370
        %v2403 = vunpack.c.l.b16 %v2371
        %v2404 = vunpack.c.l.b16 %v2372
        %v2405 = vunpack.c.l.b16 %v2373
        %v2406 = vunpack.c.l.b16 %v2374
        %v2407 = vunpack.c.l.b16 %v2375
        %v2408 = vunpack.c.l.b16 %v2376
        %v2409 = vunpack.c.l.b16 %v2377
        %v2410 = vunpack.c.l.b16 %v2378
        %v2411 = vunpack.c.l.b16 %v2379
        %v2412 = vunpack.c.l.b16 %v2380
        %v2413 = vunpack.c.l.b16 %v2381
        %v2414 = vunpack.c.l.b16 %v2382
        %v2415 = vpack.c.b16 %v2400, %v2399
        %v2416 = vpack.c.b16 %v2402, %v2401
        %v2417 = vpack.c.b16 %v2404, %v2403
        %v2418 = vpack.c.b16 %v2406, %v2405
        %v2419 = vpack.c.b16 %v2408, %v2407
        %v2420 = vpack.c.b16 %v2410, %v2409
        %v2421 = vpack.c.b16 %v2412, %v2411
        %v2422 = vpack.c.b16 %v2414, %v2413
        %2431 = vmatprep.subr.bf16.mxu0 0
        %2432 = vmatpush1.bf16.msra.mxu0 %v2422
        %2433 = vmatprep.subr.bf16.mxu0 0
        %2434 = vmatpush1.bf16.msra.mxu0 %v2421
        %2435 = vmatprep.subr.bf16.mxu0 0
        %2436 = vmatpush1.bf16.msra.mxu0 %v2420
        %2437 = vmatprep.subr.bf16.mxu0 0
        %2438 = vmatpush1.bf16.msra.mxu0 %v2419
        %2439 = vmatprep.subr.bf16.mxu0 0
        %2440 = vmatpush1.bf16.msra.mxu0 %v2418
        %2441 = vmatprep.subr.bf16.mxu0 0
        %2442 = vmatpush1.bf16.msra.mxu0 %v2417
        %2443 = vmatprep.subr.bf16.mxu0 0
        %2444 = vmatpush1.bf16.msra.mxu0 %v2416
        %2445 = vmatprep.subr.bf16.mxu0 0
        %2446 = vmatpush1.bf16.msra.mxu0 %v2415
        %2447 = vmatprep.subr.bf16.mxu0 0
        %2448 = vmatpush2.bf16.msra.mxu0 0
        %2449 = vmatprep.subr.bf16.mxu0 0
        %2450 = vmatpush2.bf16.msra.mxu0 0
        %2451 = vmatprep.subr.bf16.mxu0 0
        %2452 = vmatpush2.bf16.msra.mxu0 0
        %2453 = vmatprep.subr.bf16.mxu0 0
        %2454 = vmatpush2.bf16.msra.mxu0 0
        %2455 = vmatprep.subr.bf16.mxu0 0
        %2456 = vmatpush2.bf16.msra.mxu0 0
        %2457 = vmatprep.subr.bf16.mxu0 0
        %2458 = vmatpush2.bf16.msra.mxu0 0
        %2459 = vmatprep.subr.bf16.mxu0 0
        %2460 = vmatpush2.bf16.msra.mxu0 0
        %2461 = vmatprep.subr.bf16.mxu0 0
        %2462 = vmatpush2.bf16.msra.mxu0 0
        %2463 = vmatprep.mubr.bf16.mxu0 0
        %2464 = vmatmul.mubr.bf16.gmra.mxu0 %v2365
        %v2465 = vpop.f32.mrf.mxu0
        %v2466 = vadd.f32 0.0, %v2465
        %v2467 = vpop.f32.mrf.mxu0
        %v2468 = vpop.f32.mrf.mxu0
        %v2469 = vadd.f32 0.0, %v2468
        %v2470 = vpop.f32.mrf.mxu0
        %2471 = vdwg.mxu0
        %v2472 = vadd.f32 %v2197, %v2466
        %v2473 = vadd.f32 %v2198, %v2469
        %s2474 = scalar_lea.vmem [#allocation2], 768
        %v2475 = vld [vmem:[%s2474] sm:$0xff]
        %v2476 = vld [vmem:[%s2474 + $0x8] sm:$0xff]
        %v2477 = vld [vmem:[%s2474 + $0x10] sm:$0xff]
        %v2478 = vld [vmem:[%s2474 + $0x18] sm:$0xff]
        %v2479 = vld [vmem:[%s2474 + $0x20] sm:$0xff]
        %v2480 = vld [vmem:[%s2474 + $0x28] sm:$0xff]
        %v2481 = vld [vmem:[%s2474 + $0x30] sm:$0xff]
        %v2482 = vld [vmem:[%s2474 + $0x38] sm:$0xff]
        %v2483 = vld [vmem:[%s2474 + $0x40] sm:$0xff]
        %v2484 = vld [vmem:[%s2474 + $0x48] sm:$0xff]
        %v2485 = vld [vmem:[%s2474 + $0x50] sm:$0xff]
        %v2486 = vld [vmem:[%s2474 + $0x58] sm:$0xff]
        %v2487 = vld [vmem:[%s2474 + $0x60] sm:$0xff]
        %v2488 = vld [vmem:[%s2474 + $0x68] sm:$0xff]
        %v2489 = vld [vmem:[%s2474 + $0x70] sm:$0xff]
        %v2490 = vld [vmem:[%s2474 + $0x78] sm:$0xff]
        %v2507 = vunpack.c.l.b16 %v2475
        %v2508 = vunpack.c.h.b16 %v2475
        %v2509 = vunpack.c.l.b16 %v2476
        %v2510 = vunpack.c.h.b16 %v2476
        %v2511 = vunpack.c.l.b16 %v2477
        %v2512 = vunpack.c.h.b16 %v2477
        %v2513 = vunpack.c.l.b16 %v2478
        %v2514 = vunpack.c.h.b16 %v2478
        %v2515 = vunpack.c.l.b16 %v2479
        %v2516 = vunpack.c.h.b16 %v2479
        %v2517 = vunpack.c.l.b16 %v2480
        %v2518 = vunpack.c.h.b16 %v2480
        %v2519 = vunpack.c.l.b16 %v2481
        %v2520 = vunpack.c.h.b16 %v2481
        %v2521 = vunpack.c.l.b16 %v2482
        %v2522 = vunpack.c.h.b16 %v2482
        %v2523 = vunpack.c.l.b16 %v2483
        %v2524 = vunpack.c.h.b16 %v2483
        %v2525 = vunpack.c.l.b16 %v2484
        %v2526 = vunpack.c.h.b16 %v2484
        %v2527 = vunpack.c.l.b16 %v2485
        %v2528 = vunpack.c.h.b16 %v2485
        %v2529 = vunpack.c.l.b16 %v2486
        %v2530 = vunpack.c.h.b16 %v2486
        %v2531 = vunpack.c.l.b16 %v2487
        %v2532 = vunpack.c.h.b16 %v2487
        %v2533 = vunpack.c.l.b16 %v2488
        %v2534 = vunpack.c.h.b16 %v2488
        %v2535 = vunpack.c.l.b16 %v2489
        %v2536 = vunpack.c.h.b16 %v2489
        %v2537 = vunpack.c.l.b16 %v2490
        %v2538 = vunpack.c.h.b16 %v2490
        %v2539 = vpack.c.b16 %v2509, %v2507
        %v2540 = vpack.c.b16 %v2510, %v2508
        %v2541 = vpack.c.b16 %v2513, %v2511
        %v2542 = vpack.c.b16 %v2514, %v2512
        %v2543 = vpack.c.b16 %v2517, %v2515
        %v2544 = vpack.c.b16 %v2518, %v2516
        %v2545 = vpack.c.b16 %v2521, %v2519
        %v2546 = vpack.c.b16 %v2522, %v2520
        %v2547 = vpack.c.b16 %v2525, %v2523
        %v2548 = vpack.c.b16 %v2526, %v2524
        %v2549 = vpack.c.b16 %v2529, %v2527
        %v2550 = vpack.c.b16 %v2530, %v2528
        %v2551 = vpack.c.b16 %v2533, %v2531
        %v2552 = vpack.c.b16 %v2534, %v2532
        %v2553 = vpack.c.b16 %v2537, %v2535
        %v2554 = vpack.c.b16 %v2538, %v2536
        %2571 = vmatprep.subr.bf16.mxu0 %v2554
        %2572 = vmatpush1.bf16.msra.mxu0 %v2553
        %2573 = vmatprep.subr.bf16.mxu0 %v2552
        %2574 = vmatpush1.bf16.msra.mxu0 %v2551
        %2575 = vmatprep.subr.bf16.mxu0 %v2550
        %2576 = vmatpush1.bf16.msra.mxu0 %v2549
        %2577 = vmatprep.subr.bf16.mxu0 %v2548
        %2578 = vmatpush1.bf16.msra.mxu0 %v2547
        %2579 = vmatprep.subr.bf16.mxu0 %v2546
        %2580 = vmatpush1.bf16.msra.mxu0 %v2545
        %2581 = vmatprep.subr.bf16.mxu0 %v2544
        %2582 = vmatpush1.bf16.msra.mxu0 %v2543
        %2583 = vmatprep.subr.bf16.mxu0 %v2542
        %2584 = vmatpush1.bf16.msra.mxu0 %v2541
        %2585 = vmatprep.subr.bf16.mxu0 %v2540
        %2586 = vmatpush1.bf16.msra.mxu0 %v2539
        %2587 = vmatprep.subr.bf16.mxu0 0
        %2588 = vmatpush2.bf16.msra.mxu0 0
        %2589 = vmatprep.subr.bf16.mxu0 0
        %2590 = vmatpush2.bf16.msra.mxu0 0
        %2591 = vmatprep.subr.bf16.mxu0 0
        %2592 = vmatpush2.bf16.msra.mxu0 0
        %2593 = vmatprep.subr.bf16.mxu0 0
        %2594 = vmatpush2.bf16.msra.mxu0 0
        %2595 = vmatprep.subr.bf16.mxu0 0
        %2596 = vmatpush2.bf16.msra.mxu0 0
        %2597 = vmatprep.subr.bf16.mxu0 0
        %2598 = vmatpush2.bf16.msra.mxu0 0
        %2599 = vmatprep.subr.bf16.mxu0 0
        %2600 = vmatpush2.bf16.msra.mxu0 0
        %2601 = vmatprep.subr.bf16.mxu0 0
        %2602 = vmatpush2.bf16.msra.mxu0 0
        %2603 = vmatprep.mubr.bf16.mxu0 0
        %2604 = vmatmul.mubr.bf16.gmra.mxu0 %v375
        %v2605 = vpop.f32.mrf.mxu0
        %v2606 = vadd.f32 0.0, %v2605
        %v2607 = vpop.f32.mrf.mxu0
        %v2608 = vadd.f32 0.0, %v2607
        %v2609 = vpop.f32.mrf.mxu0
        %v2610 = vadd.f32 0.0, %v2609
        %v2611 = vpop.f32.mrf.mxu0
        %v2612 = vadd.f32 0.0, %v2611
        %2613 = vdwg.mxu0
        %v2614 = vxor.u32 %v2606, 2147483648
        %v2615 = vxor.u32 %v2610, 2147483648
        %v2616 = vmul.f32 %v2614, 1.442695
        %v2617 = vpow.pop %v2616
        %v2618 = vmul.f32 %v2615, 1.442695
        %v2619 = vpow.pop %v2618
        %v2620 = vadd.f32 %v2617, 1.0
        %v2621 = vadd.f32 %v2619, 1.0
        %v2622 = vrcp.pop %v2620
        %v2623 = vmul.f32 1.0, %v2622
        %v2624 = vrcp.pop %v2621
        %v2625 = vmul.f32 1.0, %v2624
        %v2626 = vmul.f32 %v2606, %v2623
        %v2627 = vmul.f32 %v2610, %v2625
        %v2628 = vmul.f32 %v2626, %v2608
        %v2629 = vmul.f32 %v2627, %v2612
        %2630 = vset.pattern.permute.xlu0 6
        %2631 = vperm.xlu0 %2630, %v337
        %v2632 = vpop.permute.xlu0 %2631
        %2634 = vset.pattern.permute.xlu0 6
        %2635 = vperm.xlu0 %2634, %v338
        %v2636 = vpop.permute.xlu0 %2635
        %v2638 = vmul.f32 %v2628, %v2632
        %v2639 = vmul.f32 %v2629, %v2636
        %v2640 = vpack.c.bf16 %v2639, %v2638
        %s2641 = scalar_lea.vmem [#allocation5], 384
        %v2642 = vld [vmem:[%s2641] sm:$0xf]
        %v2643 = vld [vmem:[%s2641 + $0x4] sm:$0xf]
        %v2644 = vld [vmem:[%s2641 + $0x8] sm:$0xf]
        %v2645 = vld [vmem:[%s2641 + $0xc] sm:$0xf]
        %v2646 = vld [vmem:[%s2641 + $0x10] sm:$0xf]
        %v2647 = vld [vmem:[%s2641 + $0x14] sm:$0xf]
        %v2648 = vld [vmem:[%s2641 + $0x18] sm:$0xf]
        %v2649 = vld [vmem:[%s2641 + $0x1c] sm:$0xf]
        %v2650 = vld [vmem:[%s2641 + $0x20] sm:$0xf]
        %v2651 = vld [vmem:[%s2641 + $0x24] sm:$0xf]
        %v2652 = vld [vmem:[%s2641 + $0x28] sm:$0xf]
        %v2653 = vld [vmem:[%s2641 + $0x2c] sm:$0xf]
        %v2654 = vld [vmem:[%s2641 + $0x30] sm:$0xf]
        %v2655 = vld [vmem:[%s2641 + $0x34] sm:$0xf]
        %v2656 = vld [vmem:[%s2641 + $0x38] sm:$0xf]
        %v2657 = vld [vmem:[%s2641 + $0x3c] sm:$0xf]
        %v2674 = vunpack.c.l.b16 %v2642
        %v2675 = vunpack.c.l.b16 %v2643
        %v2676 = vunpack.c.l.b16 %v2644
        %v2677 = vunpack.c.l.b16 %v2645
        %v2678 = vunpack.c.l.b16 %v2646
        %v2679 = vunpack.c.l.b16 %v2647
        %v2680 = vunpack.c.l.b16 %v2648
        %v2681 = vunpack.c.l.b16 %v2649
        %v2682 = vunpack.c.l.b16 %v2650
        %v2683 = vunpack.c.l.b16 %v2651
        %v2684 = vunpack.c.l.b16 %v2652
        %v2685 = vunpack.c.l.b16 %v2653
        %v2686 = vunpack.c.l.b16 %v2654
        %v2687 = vunpack.c.l.b16 %v2655
        %v2688 = vunpack.c.l.b16 %v2656
        %v2689 = vunpack.c.l.b16 %v2657
        %v2690 = vpack.c.b16 %v2675, %v2674
        %v2691 = vpack.c.b16 %v2677, %v2676
        %v2692 = vpack.c.b16 %v2679, %v2678
        %v2693 = vpack.c.b16 %v2681, %v2680
        %v2694 = vpack.c.b16 %v2683, %v2682
        %v2695 = vpack.c.b16 %v2685, %v2684
        %v2696 = vpack.c.b16 %v2687, %v2686
        %v2697 = vpack.c.b16 %v2689, %v2688
        %2706 = vmatprep.subr.bf16.mxu0 0
        %2707 = vmatpush1.bf16.msra.mxu0 %v2697
        %2708 = vmatprep.subr.bf16.mxu0 0
        %2709 = vmatpush1.bf16.msra.mxu0 %v2696
        %2710 = vmatprep.subr.bf16.mxu0 0
        %2711 = vmatpush1.bf16.msra.mxu0 %v2695
        %2712 = vmatprep.subr.bf16.mxu0 0
        %2713 = vmatpush1.bf16.msra.mxu0 %v2694
        %2714 = vmatprep.subr.bf16.mxu0 0
        %2715 = vmatpush1.bf16.msra.mxu0 %v2693
        %2716 = vmatprep.subr.bf16.mxu0 0
        %2717 = vmatpush1.bf16.msra.mxu0 %v2692
        %2718 = vmatprep.subr.bf16.mxu0 0
        %2719 = vmatpush1.bf16.msra.mxu0 %v2691
        %2720 = vmatprep.subr.bf16.mxu0 0
        %2721 = vmatpush1.bf16.msra.mxu0 %v2690
        %2722 = vmatprep.subr.bf16.mxu0 0
        %2723 = vmatpush2.bf16.msra.mxu0 0
        %2724 = vmatprep.subr.bf16.mxu0 0
        %2725 = vmatpush2.bf16.msra.mxu0 0
        %2726 = vmatprep.subr.bf16.mxu0 0
        %2727 = vmatpush2.bf16.msra.mxu0 0
        %2728 = vmatprep.subr.bf16.mxu0 0
        %2729 = vmatpush2.bf16.msra.mxu0 0
        %2730 = vmatprep.subr.bf16.mxu0 0
        %2731 = vmatpush2.bf16.msra.mxu0 0
        %2732 = vmatprep.subr.bf16.mxu0 0
        %2733 = vmatpush2.bf16.msra.mxu0 0
        %2734 = vmatprep.subr.bf16.mxu0 0
        %2735 = vmatpush2.bf16.msra.mxu0 0
        %2736 = vmatprep.subr.bf16.mxu0 0
        %2737 = vmatpush2.bf16.msra.mxu0 0
        %2738 = vmatprep.mubr.bf16.mxu0 0
        %2739 = vmatmul.mubr.bf16.gmra.mxu0 %v2640
        %v2740 = vpop.f32.mrf.mxu0
        %v2741 = vadd.f32 0.0, %v2740
        %v2742 = vpop.f32.mrf.mxu0
        %v2743 = vpop.f32.mrf.mxu0
        %v2744 = vadd.f32 0.0, %v2743
        %v2745 = vpop.f32.mrf.mxu0
        %2746 = vdwg.mxu0
        %v2747 = vadd.f32 %v2472, %v2741
        %v2748 = vadd.f32 %v2473, %v2744
        %s2749 = scalar_lea.vmem [#allocation2], 896
        %v2750 = vld [vmem:[%s2749] sm:$0xff]
        %v2751 = vld [vmem:[%s2749 + $0x8] sm:$0xff]
        %v2752 = vld [vmem:[%s2749 + $0x10] sm:$0xff]
        %v2753 = vld [vmem:[%s2749 + $0x18] sm:$0xff]
        %v2754 = vld [vmem:[%s2749 + $0x20] sm:$0xff]
        %v2755 = vld [vmem:[%s2749 + $0x28] sm:$0xff]
        %v2756 = vld [vmem:[%s2749 + $0x30] sm:$0xff]
        %v2757 = vld [vmem:[%s2749 + $0x38] sm:$0xff]
        %v2758 = vld [vmem:[%s2749 + $0x40] sm:$0xff]
        %v2759 = vld [vmem:[%s2749 + $0x48] sm:$0xff]
        %v2760 = vld [vmem:[%s2749 + $0x50] sm:$0xff]
        %v2761 = vld [vmem:[%s2749 + $0x58] sm:$0xff]
        %v2762 = vld [vmem:[%s2749 + $0x60] sm:$0xff]
        %v2763 = vld [vmem:[%s2749 + $0x68] sm:$0xff]
        %v2764 = vld [vmem:[%s2749 + $0x70] sm:$0xff]
        %v2765 = vld [vmem:[%s2749 + $0x78] sm:$0xff]
        %v2782 = vunpack.c.l.b16 %v2750
        %v2783 = vunpack.c.h.b16 %v2750
        %v2784 = vunpack.c.l.b16 %v2751
        %v2785 = vunpack.c.h.b16 %v2751
        %v2786 = vunpack.c.l.b16 %v2752
        %v2787 = vunpack.c.h.b16 %v2752
        %v2788 = vunpack.c.l.b16 %v2753
        %v2789 = vunpack.c.h.b16 %v2753
        %v2790 = vunpack.c.l.b16 %v2754
        %v2791 = vunpack.c.h.b16 %v2754
        %v2792 = vunpack.c.l.b16 %v2755
        %v2793 = vunpack.c.h.b16 %v2755
        %v2794 = vunpack.c.l.b16 %v2756
        %v2795 = vunpack.c.h.b16 %v2756
        %v2796 = vunpack.c.l.b16 %v2757
        %v2797 = vunpack.c.h.b16 %v2757
        %v2798 = vunpack.c.l.b16 %v2758
        %v2799 = vunpack.c.h.b16 %v2758
        %v2800 = vunpack.c.l.b16 %v2759
        %v2801 = vunpack.c.h.b16 %v2759
        %v2802 = vunpack.c.l.b16 %v2760
        %v2803 = vunpack.c.h.b16 %v2760
        %v2804 = vunpack.c.l.b16 %v2761
        %v2805 = vunpack.c.h.b16 %v2761
        %v2806 = vunpack.c.l.b16 %v2762
        %v2807 = vunpack.c.h.b16 %v2762
        %v2808 = vunpack.c.l.b16 %v2763
        %v2809 = vunpack.c.h.b16 %v2763
        %v2810 = vunpack.c.l.b16 %v2764
        %v2811 = vunpack.c.h.b16 %v2764
        %v2812 = vunpack.c.l.b16 %v2765
        %v2813 = vunpack.c.h.b16 %v2765
        %v2814 = vpack.c.b16 %v2784, %v2782
        %v2815 = vpack.c.b16 %v2785, %v2783
        %v2816 = vpack.c.b16 %v2788, %v2786
        %v2817 = vpack.c.b16 %v2789, %v2787
        %v2818 = vpack.c.b16 %v2792, %v2790
        %v2819 = vpack.c.b16 %v2793, %v2791
        %v2820 = vpack.c.b16 %v2796, %v2794
        %v2821 = vpack.c.b16 %v2797, %v2795
        %v2822 = vpack.c.b16 %v2800, %v2798
        %v2823 = vpack.c.b16 %v2801, %v2799
        %v2824 = vpack.c.b16 %v2804, %v2802
        %v2825 = vpack.c.b16 %v2805, %v2803
        %v2826 = vpack.c.b16 %v2808, %v2806
        %v2827 = vpack.c.b16 %v2809, %v2807
        %v2828 = vpack.c.b16 %v2812, %v2810
        %v2829 = vpack.c.b16 %v2813, %v2811
        %2846 = vmatprep.subr.bf16.mxu0 %v2829
        %2847 = vmatpush1.bf16.msra.mxu0 %v2828
        %2848 = vmatprep.subr.bf16.mxu0 %v2827
        %2849 = vmatpush1.bf16.msra.mxu0 %v2826
        %2850 = vmatprep.subr.bf16.mxu0 %v2825
        %2851 = vmatpush1.bf16.msra.mxu0 %v2824
        %2852 = vmatprep.subr.bf16.mxu0 %v2823
        %2853 = vmatpush1.bf16.msra.mxu0 %v2822
        %2854 = vmatprep.subr.bf16.mxu0 %v2821
        %2855 = vmatpush1.bf16.msra.mxu0 %v2820
        %2856 = vmatprep.subr.bf16.mxu0 %v2819
        %2857 = vmatpush1.bf16.msra.mxu0 %v2818
        %2858 = vmatprep.subr.bf16.mxu0 %v2817
        %2859 = vmatpush1.bf16.msra.mxu0 %v2816
        %2860 = vmatprep.subr.bf16.mxu0 %v2815
        %2861 = vmatpush1.bf16.msra.mxu0 %v2814
        %2862 = vmatprep.subr.bf16.mxu0 0
        %2863 = vmatpush2.bf16.msra.mxu0 0
        %2864 = vmatprep.subr.bf16.mxu0 0
        %2865 = vmatpush2.bf16.msra.mxu0 0
        %2866 = vmatprep.subr.bf16.mxu0 0
        %2867 = vmatpush2.bf16.msra.mxu0 0
        %2868 = vmatprep.subr.bf16.mxu0 0
        %2869 = vmatpush2.bf16.msra.mxu0 0
        %2870 = vmatprep.subr.bf16.mxu0 0
        %2871 = vmatpush2.bf16.msra.mxu0 0
        %2872 = vmatprep.subr.bf16.mxu0 0
        %2873 = vmatpush2.bf16.msra.mxu0 0
        %2874 = vmatprep.subr.bf16.mxu0 0
        %2875 = vmatpush2.bf16.msra.mxu0 0
        %2876 = vmatprep.subr.bf16.mxu0 0
        %2877 = vmatpush2.bf16.msra.mxu0 0
        %2878 = vmatprep.mubr.bf16.mxu0 0
        %2879 = vmatmul.mubr.bf16.gmra.mxu0 %v375
        %v2880 = vpop.f32.mrf.mxu0
        %v2881 = vadd.f32 0.0, %v2880
        %v2882 = vpop.f32.mrf.mxu0
        %v2883 = vadd.f32 0.0, %v2882
        %v2884 = vpop.f32.mrf.mxu0
        %v2885 = vadd.f32 0.0, %v2884
        %v2886 = vpop.f32.mrf.mxu0
        %v2887 = vadd.f32 0.0, %v2886
        %2888 = vdwg.mxu0
        %v2889 = vxor.u32 %v2881, 2147483648
        %v2890 = vxor.u32 %v2885, 2147483648
        %v2891 = vmul.f32 %v2889, 1.442695
        %v2892 = vpow.pop %v2891
        %v2893 = vmul.f32 %v2890, 1.442695
        %v2894 = vpow.pop %v2893
        %v2895 = vadd.f32 %v2892, 1.0
        %v2896 = vadd.f32 %v2894, 1.0
        %v2897 = vrcp.pop %v2895
        %v2898 = vmul.f32 1.0, %v2897
        %v2899 = vrcp.pop %v2896
        %v2900 = vmul.f32 1.0, %v2899
        %v2901 = vmul.f32 %v2881, %v2898
        %v2902 = vmul.f32 %v2885, %v2900
        %v2903 = vmul.f32 %v2901, %v2883
        %v2904 = vmul.f32 %v2902, %v2887
        %2905 = vset.pattern.permute.xlu0 7
        %2906 = vperm.xlu0 %2905, %v337
        %v2907 = vpop.permute.xlu0 %2906
        %2909 = vset.pattern.permute.xlu0 7
        %2910 = vperm.xlu0 %2909, %v338
        %v2911 = vpop.permute.xlu0 %2910
        %v2913 = vmul.f32 %v2903, %v2907
        %v2914 = vmul.f32 %v2904, %v2911
        %v2915 = vpack.c.bf16 %v2914, %v2913
        %s2916 = scalar_lea.vmem [#allocation5], 448
        %v2917 = vld [vmem:[%s2916] sm:$0xf]
        %v2918 = vld [vmem:[%s2916 + $0x4] sm:$0xf]
        %v2919 = vld [vmem:[%s2916 + $0x8] sm:$0xf]
        %v2920 = vld [vmem:[%s2916 + $0xc] sm:$0xf]
        %v2921 = vld [vmem:[%s2916 + $0x10] sm:$0xf]
        %v2922 = vld [vmem:[%s2916 + $0x14] sm:$0xf]
        %v2923 = vld [vmem:[%s2916 + $0x18] sm:$0xf]
        %v2924 = vld [vmem:[%s2916 + $0x1c] sm:$0xf]
        %v2925 = vld [vmem:[%s2916 + $0x20] sm:$0xf]
        %v2926 = vld [vmem:[%s2916 + $0x24] sm:$0xf]
        %v2927 = vld [vmem:[%s2916 + $0x28] sm:$0xf]
        %v2928 = vld [vmem:[%s2916 + $0x2c] sm:$0xf]
        %v2929 = vld [vmem:[%s2916 + $0x30] sm:$0xf]
        %v2930 = vld [vmem:[%s2916 + $0x34] sm:$0xf]
        %v2931 = vld [vmem:[%s2916 + $0x38] sm:$0xf]
        %v2932 = vld [vmem:[%s2916 + $0x3c] sm:$0xf]
        %v2949 = vunpack.c.l.b16 %v2917
        %v2950 = vunpack.c.l.b16 %v2918
        %v2951 = vunpack.c.l.b16 %v2919
        %v2952 = vunpack.c.l.b16 %v2920
        %v2953 = vunpack.c.l.b16 %v2921
        %v2954 = vunpack.c.l.b16 %v2922
        %v2955 = vunpack.c.l.b16 %v2923
        %v2956 = vunpack.c.l.b16 %v2924
        %v2957 = vunpack.c.l.b16 %v2925
        %v2958 = vunpack.c.l.b16 %v2926
        %v2959 = vunpack.c.l.b16 %v2927
        %v2960 = vunpack.c.l.b16 %v2928
        %v2961 = vunpack.c.l.b16 %v2929
        %v2962 = vunpack.c.l.b16 %v2930
        %v2963 = vunpack.c.l.b16 %v2931
        %v2964 = vunpack.c.l.b16 %v2932
        %v2965 = vpack.c.b16 %v2950, %v2949
        %v2966 = vpack.c.b16 %v2952, %v2951
        %v2967 = vpack.c.b16 %v2954, %v2953
        %v2968 = vpack.c.b16 %v2956, %v2955
        %v2969 = vpack.c.b16 %v2958, %v2957
        %v2970 = vpack.c.b16 %v2960, %v2959
        %v2971 = vpack.c.b16 %v2962, %v2961
        %v2972 = vpack.c.b16 %v2964, %v2963
        %2981 = vmatprep.subr.bf16.mxu0 0
        %2982 = vmatpush1.bf16.msra.mxu0 %v2972
        %2983 = vmatprep.subr.bf16.mxu0 0
        %2984 = vmatpush1.bf16.msra.mxu0 %v2971
        %2985 = vmatprep.subr.bf16.mxu0 0
        %2986 = vmatpush1.bf16.msra.mxu0 %v2970
        %2987 = vmatprep.subr.bf16.mxu0 0
        %2988 = vmatpush1.bf16.msra.mxu0 %v2969
        %2989 = vmatprep.subr.bf16.mxu0 0
        %2990 = vmatpush1.bf16.msra.mxu0 %v2968
        %2991 = vmatprep.subr.bf16.mxu0 0
        %2992 = vmatpush1.bf16.msra.mxu0 %v2967
        %2993 = vmatprep.subr.bf16.mxu0 0
        %2994 = vmatpush1.bf16.msra.mxu0 %v2966
        %2995 = vmatprep.subr.bf16.mxu0 0
        %2996 = vmatpush1.bf16.msra.mxu0 %v2965
        %2997 = vmatprep.subr.bf16.mxu0 0
        %2998 = vmatpush2.bf16.msra.mxu0 0
        %2999 = vmatprep.subr.bf16.mxu0 0
        %3000 = vmatpush2.bf16.msra.mxu0 0
        %3001 = vmatprep.subr.bf16.mxu0 0
        %3002 = vmatpush2.bf16.msra.mxu0 0
        %3003 = vmatprep.subr.bf16.mxu0 0
        %3004 = vmatpush2.bf16.msra.mxu0 0
        %3005 = vmatprep.subr.bf16.mxu0 0
        %3006 = vmatpush2.bf16.msra.mxu0 0
        %3007 = vmatprep.subr.bf16.mxu0 0
        %3008 = vmatpush2.bf16.msra.mxu0 0
        %3009 = vmatprep.subr.bf16.mxu0 0
        %3010 = vmatpush2.bf16.msra.mxu0 0
        %3011 = vmatprep.subr.bf16.mxu0 0
        %3012 = vmatpush2.bf16.msra.mxu0 0
        %3013 = vmatprep.mubr.bf16.mxu0 0
        %3014 = vmatmul.mubr.bf16.gmra.mxu0 %v2915
        %v3015 = vpop.f32.mrf.mxu0
        %v3016 = vadd.f32 0.0, %v3015
        %v3017 = vpop.f32.mrf.mxu0
        %v3018 = vpop.f32.mrf.mxu0
        %v3019 = vadd.f32 0.0, %v3018
        %v3020 = vpop.f32.mrf.mxu0
        %3021 = vdwg.mxu0
        %v3022 = vadd.f32 %v2747, %v3016
        %v3023 = vadd.f32 %v2748, %v3019
        %3024 = vst [vmem:[%s320] sm:$0xff] %v3022
        %3025 = vst [vmem:[%s320 + $0x8] sm:$0xff] %v3023
        %s3026 = sand.u32 %s167, 1
        %s3027 = scalar_lea.sflag [#allocation4], %s3026
        %s3028 = sand.u32 %s167, 1
        %s3029 = smul.addr %s3028, 16
        %s3030 = scalar_lea.vmem [#allocation10], %s3029
        // Predicated region
        $region61: #{tpu_custom_call.1} parent=43 // pred_check
          %p3031 = pneg %p177
        $region62: #{tpu_custom_call.1} parent=43 // pred_check_branch
          %3033 = sbr.rel (%p3031) target = $region64
        $region63: #{tpu_custom_call.1} parent=43 // pred_region
          %s3034 = smul.u32 2, %s23
          %s3036 = ssub.s32 256, 256
          %3037 = vsyncadd %s3027, %s3036
          %s3038 = smul.addr %s3034, 128
          %s3039 = scalar_lea.hbm %s6, %s3038
          %s3040 = sshll.u32 %s3030, 4
          %s3041 = int_to_ptr.vmem [resolvable:$true] %s3040
          %3046 = dma.vmem_to_hbm [thread:$0]  %s3041, 256, %s3039, %s3027, 128, 128, 8
        $region64: #{tpu_custom_call.1} parent=43 // pred_fallthru
          _
      $region44: #{tpu_custom_call.1} parent=5 // pred_fallthru
        _
      %p3047 = scmp.le.s32.totalorder 2, %s18
      // Predicated region
      $region65: #{tpu_custom_call.1} parent=5 // pred_check
        %p3048 = pneg %p3047
      $region66: #{tpu_custom_call.1} parent=5 // pred_check_branch
        %3050 = sbr.rel (%p3048) target = $region68
      $region67: #{tpu_custom_call.1} parent=5 // pred_region
        %s3051 = ssub.s32 %s18, 2
        // Predicated region
        $region69: #{tpu_custom_call.1} parent=67 // pred_check
          %p3052 = pneg %p183
        $region70: #{tpu_custom_call.1} parent=67 // pred_check_branch
          %3054 = sbr.rel (%p3052) target = $region72
        $region71: #{tpu_custom_call.1} parent=67 // pred_region
          %s3055 = sand.u32 %s168, 1
          %s3056 = scalar_lea.sflag [#allocation4], %s3055
          %s3057 = sand.u32 %s168, 1
          %s3058 = smul.addr %s3057, 16
          %s3059 = scalar_lea.vmem [#allocation10], %s3058
          %3060 = dma.done %s3056, 256
        $region72: #{tpu_custom_call.1} parent=67 // pred_fallthru
          _
      $region68: #{tpu_custom_call.1} parent=5 // pred_fallthru
        _
    $region6: #{tpu_custom_call.1} parent=1 // loop_footer
      %s22 = sadd.s32 1, %s18
    $region7: #{tpu_custom_call.1} parent=1 // loop_footer_branch
      %17 = sbr.rel target = $region3
    $region8: #{tpu_custom_call.1} parent=1 // loop_exit
      _
    %3061 = vsyncpa [#allocation3], 1
    %s3062 = scalar_lea.sflag [#allocation3], 1
    %3063 = vsyncpa %s3062, 1
    %3064 = vsyncpa [#allocation6], 1
    %3065 = vsyncpa [#allocation9], 1
    %3066 = vsyncpa [#allocation4], 1
    %s3067 = scalar_lea.sflag [#allocation4], 1
    %3068 = vsyncpa %s3067, 1

</llo_original>
